<compile_context>
chip_gen: v5e
topology: v5e:2x2
jax: 0.10.0
libtpu: 0.0.40
codegen_flags: <defaults>
</compile_context>

<pallas_src>
import functools

import jax
import jax.numpy as jnp
from jax import lax
from jax.experimental import pallas as pl
from jax.experimental.pallas import tpu as pltpu


# --------------------------------------------------------------------------- #
# Shared epilogue: + token-type row, fused single-pass LayerNorm, store.
# --------------------------------------------------------------------------- #
def _sum_tt_layernorm(x, tti_ref, wt_ref, g_ref, b_ref, o_ref, *, eps, n_tt, use_tt):
    if use_tt:
        tti = tti_ref[...]                                    # (TB, 1) int32
        tt = wt_ref[0:1, :].astype(jnp.float32)               # (1, d)
        for t in range(1, n_tt):                              # n_tt is tiny (2)
            tt = jnp.where(tti == t, wt_ref[t:t + 1, :].astype(jnp.float32), tt)
        x = x + tt
    d = x.shape[-1]
    inv_d = 1.0 / float(d)
    s = jnp.sum(x, axis=-1, keepdims=True)
    ss = jnp.sum(x * x, axis=-1, keepdims=True)
    mean = s * inv_d
    var = jnp.maximum(ss * inv_d - mean * mean, 0.0)          # fused stats, f32
    inv = lax.rsqrt(var + eps)
    o_ref[...] = ((x - mean) * inv * g_ref[...].astype(jnp.float32)
                  + b_ref[...].astype(jnp.float32)).astype(o_ref.dtype)


# --------------------------------------------------------------------------- #
# Path 1: HBM word-embedding table, per-row DMA gather, double-buffered.
# --------------------------------------------------------------------------- #
def _bert_embed_dma_kernel(ids_ref,            # scalar prefetch: (n_p,) int32 (SMEM)
                           w_e_hbm,            # word-embedding table (HBM / ANY)
                           wp_ref,             # (TB, d) positional tile (VMEM)
                           *rest,
                           eps, tb, seq_blocks, n_tt, use_tt):
    if use_tt:
        tti_ref, wt_ref, g_ref, b_ref, o_ref, we_buf, sem = rest
    else:
        tti_ref = wt_ref = None
        g_ref, b_ref, o_ref, we_buf, sem = rest

    b = pl.program_id(0)
    j = pl.program_id(1)
    nj = pl.num_programs(1)

    def gather_block(block_j, slot):
        base = (b * seq_blocks + block_j) * tb

        def issue(t, carry):
            row = ids_ref[base + t]
            pltpu.make_async_copy(w_e_hbm.at[row], we_buf.at[slot, t],
                                  sem.at[slot]).start()
            return carry

        lax.fori_loop(0, tb, issue, 0, unroll=8)

    # Prologue: first sequence block of this batch row.
    @pl.when(j == 0)
    def _():
        gather_block(0, 0)

    # Cross-block prefetch: issue next block's row gathers BEFORE waiting on the
    # current slot, hiding the gather latency behind this block's compute.
    @pl.when(j + 1 < nj)
    def _():
        gather_block(j + 1, (j + 1) % 2)

    slot = j % 2
    # All TB row copies of this block landed on sem[slot]; their byte total
    # equals this full-slot descriptor, so one wait drains them all.
    pltpu.make_async_copy(we_buf.at[slot], we_buf.at[slot], sem.at[slot]).wait()

    x = we_buf[slot].astype(jnp.float32) + wp_ref[...].astype(jnp.float32)
    _sum_tt_layernorm(x, tti_ref, wt_ref, g_ref, b_ref, o_ref,
                      eps=eps, n_tt=n_tt, use_tt=use_tt)


# --------------------------------------------------------------------------- #
# Path 2: small vocab -> VMEM-resident table, one-hot MXU gather (no DMA).
# --------------------------------------------------------------------------- #
def _bert_embed_resident_kernel(ids_ref, we_ref, idcol_ref, wp_ref, *rest,
                                eps, tb, n_tt, use_tt):
    del ids_ref  # only needed by the DMA path
    if use_tt:
        tti_ref, wt_ref, g_ref, b_ref, o_ref = rest
    else:
        tti_ref = wt_ref = None
        g_ref, b_ref, o_ref = rest

    vocab = we_ref.shape[0]
    ids_blk = idcol_ref[...]                                   # (TB, 1) int32
    onehot = (ids_blk == lax.broadcasted_iota(jnp.int32, (tb, vocab), 1))
    onehot = onehot.astype(we_ref.dtype)
    we = jnp.dot(onehot, we_ref[...],
                 preferred_element_type=jnp.float32,
                 precision=lax.Precision.HIGHEST)              # exact row pick
    x = we + wp_ref[...].astype(jnp.float32)
    _sum_tt_layernorm(x, tti_ref, wt_ref, g_ref, b_ref, o_ref,
                      eps=eps, n_tt=n_tt, use_tt=use_tt)


# --------------------------------------------------------------------------- #
# Wrapper
# --------------------------------------------------------------------------- #
def _pick_block(pos_p, cap):
    """Largest multiple of 8 that divides pos_p and is <= cap."""
    tb = 8
    for cand in range(8, min(pos_p, cap) + 1, 8):
        if pos_p % cand == 0:
            tb = cand
    return tb


def bert_embed(input_ids, token_type_ids, params, *, use_token_type_ids=True,
               eps=1e-12, max_block=512, out_dtype=None,
               small_table_bytes=1 << 20):
    """Pallas implementation of BertEmbed.forward.

    input_ids:       (batch, pos) int
    token_type_ids:  (batch, pos) int or None
    params: W_E (vocab, d), W_pos (n_ctx, d), W_token_type (n_tt, d),
            ln_w (d,), ln_b (d,)
    returns: (batch, pos, d) out_dtype (defaults to W_E.dtype)
    """
    batch, pos = input_ids.shape
    W_E = jnp.asarray(params["W_E"])
    W_pos = jnp.asarray(params["W_pos"])
    W_tt = jnp.asarray(params["W_token_type"])
    gamma = jnp.asarray(params["ln_w"]).reshape(1, -1)
    beta = jnp.asarray(params["ln_b"]).reshape(1, -1)
    d_vocab, d_model = W_E.shape
    n_tt = W_tt.shape[0]
    use_tt = bool(use_token_type_ids)
    if out_dtype is None:
        out_dtype = W_E.dtype
    if W_pos.shape[0] < pos:
        raise ValueError(f"n_ctx={W_pos.shape[0]} < pos={pos}")

    # Pad sequence so blocks are (8,128)-legal; padded tokens use id 0 and are
    # sliced off at the end.
    pos_p = ((pos + 7) // 8) * 8
    TB = _pick_block(pos_p, cap=max(8, max_block))
    seq_blocks = pos_p // TB
    pad = pos_p - pos

    ids = input_ids.astype(jnp.int32)
    tti = (jnp.zeros_like(ids) if token_type_ids is None
           else token_type_ids.astype(jnp.int32))
    if pad:
        ids = jnp.pad(ids, ((0, 0), (0, pad)))
        tti = jnp.pad(tti, ((0, 0), (0, pad)))
    n_p = batch * pos_p
    ids_flat = ids.reshape(n_p)
    ids_col = ids_flat.reshape(n_p, 1)
    tti_col = tti.reshape(n_p, 1)

    # Positional table restricted / padded to exactly pos_p rows (padding only
    # covers padded tail positions, which are discarded).
    Wp = W_pos[:pos_p] if W_pos.shape[0] >= pos_p else jnp.pad(
        W_pos, ((0, pos_p - W_pos.shape[0]), (0, 0)))

    itemsize = jnp.dtype(W_E.dtype).itemsize
    resident = (d_vocab * d_model * itemsize) <= small_table_bytes

    W_E_g = W_E
    if not resident and itemsize < 4:
        W_E_g = W_E.astype(jnp.float32)   # see TODO(synk) at top of file

    def _row_block(bi, ji, ids):
        return (bi * seq_blocks + ji, 0)

    if resident:
        kernel = functools.partial(_bert_embed_resident_kernel, eps=float(eps),
                                   tb=TB, n_tt=n_tt, use_tt=use_tt)
        in_specs = [
            pl.BlockSpec((d_vocab, d_model), lambda bi, ji, ids: (0, 0)),
            pl.BlockSpec((TB, 1), _row_block),
            pl.BlockSpec((TB, d_model), lambda bi, ji, ids: (ji, 0)),
        ]
        args = [W_E, ids_col, Wp]
        scratch = []
        dims = ("parallel", "parallel")
    else:
        kernel = functools.partial(_bert_embed_dma_kernel, eps=float(eps),
                                   tb=TB, seq_blocks=seq_blocks,
                                   n_tt=n_tt, use_tt=use_tt)
        in_specs = [
            pl.BlockSpec(memory_space=pl.ANY),                        # W_E (HBM)
            pl.BlockSpec((TB, d_model), lambda bi, ji, ids: (ji, 0)),
        ]
        args = [W_E_g, Wp]
        scratch = [pltpu.VMEM((2, TB, d_model), W_E_g.dtype),         # 2 slots
                   pltpu.SemaphoreType.DMA((2,))]
        dims = ("parallel", "arbitrary")   # sequential j sweep per batch row

    if use_tt:
        in_specs += [pl.BlockSpec((TB, 1), _row_block),
                     pl.BlockSpec((n_tt, d_model), lambda bi, ji, ids: (0, 0))]
        args += [tti_col, W_tt]
    in_specs += [pl.BlockSpec((1, d_model), lambda bi, ji, ids: (0, 0)),
                 pl.BlockSpec((1, d_model), lambda bi, ji, ids: (0, 0))]
    args += [gamma, beta]

    out_spec = pl.BlockSpec((TB, d_model), _row_block)

    # ---- explicit VMEM budget (pipeline tiles are double-buffered) ----------
    est = 2 * TB * d_model * (jnp.dtype(Wp.dtype).itemsize
                              + jnp.dtype(out_dtype).itemsize)
    est += 2 * TB * 128 * 4                                    # tti/id column tiles
    if resident:
        est += 2 * d_vocab * d_model * itemsize + 2 * TB * 128 * 4
    else:
        est += 2 * TB * d_model * jnp.dtype(W_E_g.dtype).itemsize
    if use_tt:
        est += 2 * max(n_tt, 8) * d_model * 4
    est += 4 * 8 * d_model * 4                                 # gamma / beta
    vmem_limit = int(min(max(est + (8 << 20), 32 << 20), 48 << 20))

    grid_spec = pltpu.PrefetchScalarGridSpec(
        num_scalar_prefetch=1,
        grid=(batch, seq_blocks),
        in_specs=in_specs,
        out_specs=out_spec,
        scratch_shapes=scratch,
    )

    out_flat = pl.pallas_call(
        kernel,
        out_shape=jax.ShapeDtypeStruct((n_p, d_model), out_dtype),
        grid_spec=grid_spec,
        compiler_params=pltpu.CompilerParams(
            dimension_semantics=dims, vmem_limit_bytes=vmem_limit),
    )(ids_flat, *args)

    out = out_flat.reshape(batch, pos_p, d_model)
    return out[:, :pos, :] if pad else out


# --------------------------------------------------------------------------- #
# Pure-JAX reference (mirrors the PyTorch forward)
# --------------------------------------------------------------------------- #
def bert_embed_ref(input_ids, token_type_ids, params, *, use_token_type_ids=True,
                   eps=1e-12):
    batch, pos = input_ids.shape
    idx = jnp.broadcast_to(jnp.arange(pos), (batch, pos))
    if token_type_ids is None:
        token_type_ids = jnp.zeros_like(input_ids)
    word = params["W_E"][input_ids].astype(jnp.float32)
    posn = params["W_pos"][idx].astype(jnp.float32)
    if use_token_type_ids:
        tt = params["W_token_type"][token_type_ids].astype(jnp.float32)
    else:
        tt = jnp.zeros_like(word)
    x = word + posn + tt
    mean = jnp.mean(x, axis=-1, keepdims=True)
    xc = x - mean
    var = jnp.mean(xc * xc, axis=-1, keepdims=True)
    return (xc * lax.rsqrt(var + eps) * params["ln_w"].astype(jnp.float32)
            + params["ln_b"].astype(jnp.float32))


if __name__ == "__main__":
    batch = 2
    d_vocab, n_ctx, d_model, n_token_types = 512, 64, 128, 2
    eps = 1e-12

    key = jax.random.PRNGKey(0)
    ks = jax.random.split(key, 9)
    params = {
        "W_E": jax.random.normal(ks[0], (d_vocab, d_model), jnp.float32) * 0.02,
        "W_pos": jax.random.normal(ks[1], (n_ctx, d_model), jnp.float32) * 0.02,
        "W_token_type": jax.random.normal(ks[2], (n_token_types, d_model),
                                          jnp.float32) * 0.02,
        "ln_w": jnp.ones((d_model,), jnp.float32)
                + 0.1 * jax.random.normal(ks[3], (d_model,), jnp.float32),
        "ln_b": jnp.linspace(-0.05, 0.05, d_model, dtype=jnp.float32),
    }

    # case 1: VMEM-resident fast path (small vocab), with token-type ids.
    pos1 = 16
    ids1 = jax.random.randint(ks[4], (batch, pos1), 0, d_vocab, dtype=jnp.int32)
    tti1 = jax.random.randint(ks[5], (batch, pos1), 0, n_token_types, dtype=jnp.int32)
    out1 = jax.block_until_ready(bert_embed(ids1, tti1, params, eps=eps))
    ref1 = bert_embed_ref(ids1, tti1, params, eps=eps)
    assert out1.shape == (batch, pos1, d_model)
    assert jnp.allclose(out1, ref1, atol=1e-4, rtol=1e-4), "mismatch (resident path)"

    # case 2: HBM DMA-gather path, 3 sequence blocks -> exercises the
    # double-buffered cross-block prefetch and batch transitions.
    pos2 = 48
    ids2 = jax.random.randint(ks[6], (batch, pos2), 0, d_vocab, dtype=jnp.int32)
    tti2 = jax.random.randint(ks[7], (batch, pos2), 0, n_token_types, dtype=jnp.int32)
    out2 = jax.block_until_ready(
        bert_embed(ids2, tti2, params, eps=eps, max_block=16, small_table_bytes=0))
    ref2 = bert_embed_ref(ids2, tti2, params, eps=eps)
    assert out2.shape == (batch, pos2, d_model)
    assert jnp.allclose(out2, ref2, atol=1e-4, rtol=1e-4), "mismatch (dma path)"

    # case 3: ragged length (padding), no token-type ids, DMA path.
    pos3 = 12
    ids3 = jax.random.randint(ks[8], (batch, pos3), 0, d_vocab, dtype=jnp.int32)
    out3 = jax.block_until_ready(
        bert_embed(ids3, None, params, use_token_type_ids=False, eps=eps,
                   small_table_bytes=0))
    ref3 = bert_embed_ref(ids3, None, params, use_token_type_ids=False, eps=eps)
    assert out3.shape == (batch, pos3, d_model)
    assert jnp.allclose(out3, ref3, atol=1e-4, rtol=1e-4), "mismatch (padded/no-tt)"

    # case 4: bf16 tables + bf16 output (halved HBM bytes), resident path.
    params_bf16 = {k: (v.astype(jnp.bfloat16)
                       if k in ("W_E", "W_pos", "W_token_type") else v)
                   for k, v in params.items()}
    out4 = jax.block_until_ready(bert_embed(ids2, tti2, params_bf16, eps=eps))
    ref4 = bert_embed_ref(ids2, tti2, params_bf16, eps=eps)
    assert out4.dtype == jnp.bfloat16
    assert jnp.allclose(out4.astype(jnp.float32), ref4, atol=5e-2, rtol=5e-2), \
        "mismatch (bf16)"

    print("KERNEL_OK")
</pallas_src>

<mosaic_0001>
module attributes {stable_mosaic.version = 11 : i64} {
  func.func @_bert_embed_resident_kernel(%arg0: i32, %arg1: i32, %arg2: memref<32xi32, #tpu.memory_space<smem>>, %arg3: memref<512x128xf32, #tpu.memory_space<vmem>>, %arg4: memref<16x1xi32, #tpu.memory_space<vmem>>, %arg5: memref<16x128xf32, #tpu.memory_space<vmem>>, %arg6: memref<16x1xi32, #tpu.memory_space<vmem>>, %arg7: memref<2x128xf32, #tpu.memory_space<vmem>>, %arg8: memref<1x128xf32, #tpu.memory_space<vmem>>, %arg9: memref<1x128xf32, #tpu.memory_space<vmem>>, %arg10: memref<16x128xf32, #tpu.memory_space<vmem>>) attributes {dimension_semantics = [#tpu.dimension_semantics<parallel>, #tpu.dimension_semantics<parallel>], iteration_bounds = array<i64: 2, 1>, scalar_prefetch = 1 : i64, scratch_operands = 0 : i64, tpu.core_type = #tpu.core_type<tc>, window_params = [{pipeline_mode = #tpu.pipeline_mode<synchronous>, transform_indices = @transform_0, window_bounds = array<i64: 512, 128>}, {transform_indices = @transform_1, window_bounds = array<i64: 16, 1>}, {transform_indices = @transform_2, window_bounds = array<i64: 16, 128>}, {transform_indices = @transform_3, window_bounds = array<i64: 16, 1>}, {pipeline_mode = #tpu.pipeline_mode<synchronous>, transform_indices = @transform_4, window_bounds = array<i64: 2, 128>}, {pipeline_mode = #tpu.pipeline_mode<synchronous>, transform_indices = @transform_5, window_bounds = array<i64: 1, 128>}, {pipeline_mode = #tpu.pipeline_mode<synchronous>, transform_indices = @transform_6, window_bounds = array<i64: 1, 128>}, {transform_indices = @transform_7, window_bounds = array<i64: 16, 128>}]} {
    %c0 = arith.constant 0 : index
    %c0_0 = arith.constant 0 : index
    %0 = vector.load %arg4[%c0, %c0_0] : memref<16x1xi32, #tpu.memory_space<vmem>>, vector<16x1xi32>
    %1 = tpu.iota {dimensions = array<i32: 1>} : vector<16x512xi32>
    %2 = vector.broadcast %0 : vector<16x1xi32> to vector<16x512xi32>
    %3 = arith.cmpi eq, %2, %1 : vector<16x512xi32>
    %4 = arith.extui %3 : vector<16x512xi1> to vector<16x512xi32>
    %5 = arith.sitofp %4 : vector<16x512xi32> to vector<16x512xf32>
    %c0_1 = arith.constant 0 : index
    %c0_2 = arith.constant 0 : index
    %6 = vector.load %arg3[%c0_1, %c0_2] : memref<512x128xf32, #tpu.memory_space<vmem>>, vector<512x128xf32>
    %cst = arith.constant dense<0.000000e+00> : vector<16x128xf32>
    %7 = tpu.matmul %5, %6, %cst {dimension_numbers = #tpu.dot_dimension_numbers<[1], [0], [0], [1], [0, 0, 1, 1], [], []>, precision = #tpu.contract_precision<fp32>} : vector<16x512xf32>, vector<512x128xf32>, vector<16x128xf32> -> vector<16x128xf32>
    %c0_3 = arith.constant 0 : index
    %c0_4 = arith.constant 0 : index
    %8 = vector.load %arg5[%c0_3, %c0_4] : memref<16x128xf32, #tpu.memory_space<vmem>>, vector<16x128xf32>
    %9 = arith.addf %7, %8 : vector<16x128xf32>
    %c0_5 = arith.constant 0 : index
    %c0_6 = arith.constant 0 : index
    %10 = vector.load %arg6[%c0_5, %c0_6] : memref<16x1xi32, #tpu.memory_space<vmem>>, vector<16x1xi32>
    %c0_7 = arith.constant 0 : index
    %c0_8 = arith.constant 0 : index
    %11 = vector.load %arg7[%c0_7, %c0_8] : memref<2x128xf32, #tpu.memory_space<vmem>>, vector<1x128xf32>
    %c1_i32 = arith.constant 1 : i32
    %12 = vector.broadcast %c1_i32 : i32 to vector<16x1xi32>
    %13 = arith.cmpi eq, %10, %12 : vector<16x1xi32>
    %c1 = arith.constant 1 : index
    %c0_9 = arith.constant 0 : index
    %14 = vector.load %arg7[%c1, %c0_9] : memref<2x128xf32, #tpu.memory_space<vmem>>, vector<1x128xf32>
    %15 = vector.shape_cast %13 : vector<16x1xi1> to vector<16x1xi1>
    %16 = vector.broadcast %15 : vector<16x1xi1> to vector<16x128xi1>
    %17 = vector.shape_cast %14 : vector<1x128xf32> to vector<1x128xf32>
    %18 = vector.broadcast %17 : vector<1x128xf32> to vector<16x128xf32>
    %19 = vector.shape_cast %11 : vector<1x128xf32> to vector<1x128xf32>
    %20 = vector.broadcast %19 : vector<1x128xf32> to vector<16x128xf32>
    %21 = arith.select %16, %18, %20 : vector<16x128xi1>, vector<16x128xf32>
    %22 = arith.addf %9, %21 : vector<16x128xf32>
    %cst_10 = arith.constant dense<0.000000e+00> : vector<16xf32>
    %23 = vector.multi_reduction <add>, %22, %cst_10 [1] : vector<16x128xf32> to vector<16xf32>
    %24 = vector.shape_cast %23 : vector<16xf32> to vector<16x1xf32>
    %25 = arith.mulf %22, %22 : vector<16x128xf32>
    %cst_11 = arith.constant dense<0.000000e+00> : vector<16xf32>
    %26 = vector.multi_reduction <add>, %25, %cst_11 [1] : vector<16x128xf32> to vector<16xf32>
    %27 = vector.shape_cast %26 : vector<16xf32> to vector<16x1xf32>
    %cst_12 = arith.constant 7.812500e-03 : f32
    %28 = vector.broadcast %cst_12 : f32 to vector<16x1xf32>
    %29 = arith.mulf %24, %28 : vector<16x1xf32>
    %cst_13 = arith.constant 7.812500e-03 : f32
    %30 = vector.broadcast %cst_13 : f32 to vector<16x1xf32>
    %31 = arith.mulf %27, %30 : vector<16x1xf32>
    %32 = arith.mulf %29, %29 : vector<16x1xf32>
    %33 = arith.subf %31, %32 : vector<16x1xf32>
    %cst_14 = arith.constant 0.000000e+00 : f32
    %34 = vector.broadcast %cst_14 : f32 to vector<16x1xf32>
    %35 = arith.maximumf %33, %34 : vector<16x1xf32>
    %cst_15 = arith.constant 9.99999996E-13 : f32
    %36 = vector.broadcast %cst_15 : f32 to vector<16x1xf32>
    %37 = arith.addf %35, %36 : vector<16x1xf32>
    %38 = math.rsqrt %37 : vector<16x1xf32>
    %39 = vector.broadcast %29 : vector<16x1xf32> to vector<16x128xf32>
    %40 = arith.subf %22, %39 : vector<16x128xf32>
    %41 = vector.broadcast %38 : vector<16x1xf32> to vector<16x128xf32>
    %42 = arith.mulf %40, %41 : vector<16x128xf32>
    %c0_16 = arith.constant 0 : index
    %c0_17 = arith.constant 0 : index
    %43 = vector.load %arg8[%c0_16, %c0_17] : memref<1x128xf32, #tpu.memory_space<vmem>>, vector<1x128xf32>
    %44 = vector.broadcast %43 : vector<1x128xf32> to vector<16x128xf32>
    %45 = arith.mulf %42, %44 : vector<16x128xf32>
    %c0_18 = arith.constant 0 : index
    %c0_19 = arith.constant 0 : index
    %46 = vector.load %arg9[%c0_18, %c0_19] : memref<1x128xf32, #tpu.memory_space<vmem>>, vector<1x128xf32>
    %47 = vector.broadcast %46 : vector<1x128xf32> to vector<16x128xf32>
    %48 = arith.addf %45, %47 : vector<16x128xf32>
    %c0_20 = arith.constant 0 : index
    %c0_21 = arith.constant 0 : index
    %49 = vector.load %arg10[%c0_20, %c0_21] : memref<16x128xf32, #tpu.memory_space<vmem>>, vector<16x128xf32>
    tpu.vector_store %arg10[%c0_20, %c0_21], %48 {strides = array<i32>} : memref<16x128xf32, #tpu.memory_space<vmem>>, vector<16x128xf32>,
    return
  }
  func.func @transform_0(%arg0: i32, %arg1: i32, %arg2: memref<32xi32, #tpu.memory_space<smem>>) -> (i32, i32) {
    %c0_i32 = arith.constant 0 : i32
    %c0_i32_0 = arith.constant 0 : i32
    %c0_i32_1 = arith.constant 0 : i32
    return %c0_i32, %c0_i32_0 : i32, i32
  }
  func.func @transform_1(%arg0: i32, %arg1: i32, %arg2: memref<32xi32, #tpu.memory_space<smem>>) -> (i32, i32) {
    %c1_i32 = arith.constant 1 : i32
    %0 = arith.muli %arg0, %c1_i32 : i32
    %1 = arith.addi %0, %arg1 : i32
    %c0_i32 = arith.constant 0 : i32
    %c0_i32_0 = arith.constant 0 : i32
    return %1, %c0_i32 : i32, i32
  }
  func.func @transform_2(%arg0: i32, %arg1: i32, %arg2: memref<32xi32, #tpu.memory_space<smem>>) -> (i32, i32) {
    %c0_i32 = arith.constant 0 : i32
    %c0_i32_0 = arith.constant 0 : i32
    return %arg1, %c0_i32 : i32, i32
  }
  func.func @transform_3(%arg0: i32, %arg1: i32, %arg2: memref<32xi32, #tpu.memory_space<smem>>) -> (i32, i32) {
    %c1_i32 = arith.constant 1 : i32
    %0 = arith.muli %arg0, %c1_i32 : i32
    %1 = arith.addi %0, %arg1 : i32
    %c0_i32 = arith.constant 0 : i32
    %c0_i32_0 = arith.constant 0 : i32
    return %1, %c0_i32 : i32, i32
  }
  func.func @transform_4(%arg0: i32, %arg1: i32, %arg2: memref<32xi32, #tpu.memory_space<smem>>) -> (i32, i32) {
    %c0_i32 = arith.constant 0 : i32
    %c0_i32_0 = arith.constant 0 : i32
    %c0_i32_1 = arith.constant 0 : i32
    return %c0_i32, %c0_i32_0 : i32, i32
  }
  func.func @transform_5(%arg0: i32, %arg1: i32, %arg2: memref<32xi32, #tpu.memory_space<smem>>) -> (i32, i32) {
    %c0_i32 = arith.constant 0 : i32
    %c0_i32_0 = arith.constant 0 : i32
    %c0_i32_1 = arith.constant 0 : i32
    return %c0_i32, %c0_i32_0 : i32, i32
  }
  func.func @transform_6(%arg0: i32, %arg1: i32, %arg2: memref<32xi32, #tpu.memory_space<smem>>) -> (i32, i32) {
    %c0_i32 = arith.constant 0 : i32
    %c0_i32_0 = arith.constant 0 : i32
    %c0_i32_1 = arith.constant 0 : i32
    return %c0_i32, %c0_i32_0 : i32, i32
  }
  func.func @transform_7(%arg0: i32, %arg1: i32, %arg2: memref<32xi32, #tpu.memory_space<smem>>) -> (i32, i32) {
    %c1_i32 = arith.constant 1 : i32
    %0 = arith.muli %arg0, %c1_i32 : i32
    %1 = arith.addi %0, %arg1 : i32
    %c0_i32 = arith.constant 0 : i32
    %c0_i32_0 = arith.constant 0 : i32
    return %1, %c0_i32 : i32, i32
  }
}

</mosaic_0001>

<llo_original>
// kernel: tpu_custom_call.1
$region0: #{tpu_custom_call.1}
  #allocation0 [shape = 'u32[]', space=smem, size = 0x4, offset = 0x4, fixed_abs, tag = 'smem constant byte address 0x4 - core index']
  #allocation1 [shape = 'u32[72,128]{1,0:T(1,128)}', space=vmem, size = 0x9000, scoped, tag = 'internal scratch']
  #allocation2 [shape = 's32[1]{0}', space=sflag, size = 0x4, scoped, tag = 'scoped memory for tpu_custom_call.1']
  #allocation3 [shape = 'u8[512]{0}', space=smem, size = 0x200, scoped, tag = 'prefetched SMEM operand 0']
  %s0 = inlined_call_operand.vmem [shape: s32[32], index: 0, kind: input, shape index: {}]
  %s1 = inlined_call_operand.hbm [shape: f32[512,128], index: 1, kind: input, shape index: {}]
  %s2 = inlined_call_operand.vmem [shape: s32[32,1], index: 2, kind: input, shape index: {}]
  %s3 = inlined_call_operand.vmem [shape: f32[16,128], index: 3, kind: input, shape index: {}]
  %s4 = inlined_call_operand.vmem [shape: s32[32,1], index: 4, kind: input, shape index: {}]
  %s5 = inlined_call_operand.vmem [shape: f32[2,128], index: 5, kind: input, shape index: {}]
  %s6 = inlined_call_operand.vmem [shape: f32[1,128], index: 6, kind: input, shape index: {}]
  %s7 = inlined_call_operand.vmem [shape: f32[1,128], index: 7, kind: input, shape index: {}]
  %s8 = inlined_call_operand.hbm [shape: f32[32,128], index: 8, kind: output, shape index: {}]
  %s9 = sld [smem:[#allocation0]]
  $region65: #{tpu_custom_call.1} parent=0
    _
  %s11 = ssub.s32 1, %s9
  %s12 = scalar_select 0, %s11, %s9
  %s14 = sshll.u32 %s0, 4
  %s15 = int_to_ptr.vmem [resolvable:$true] %s14
  %17 = dma.vmem_to_smem %s15, 16, [#allocation3], [#allocation2]
  %19 = dma.done [#allocation2], 16
  %20 = sfence
  $region1: #{tpu_custom_call.1} parent=0
    #allocation4 [shape = 'u8[262144]{0}', space=vmem, size = 0x40000, scoped, tag = 'input window, operand 1, single buffered']
    #allocation5 [shape = 's32[2]{0}', space=sflag, size = 0x8, scoped, tag = 'scoped memory for tpu_custom_call.1']
    #allocation6 [shape = 's32[2]{0}', space=sflag, size = 0x8, scoped, tag = 'scoped memory for tpu_custom_call.1']
    #allocation7 [shape = 'u8[16384]{0}', space=vmem, size = 0x4000, scoped, tag = 'output window, operand 0']
    %21 = vsyncpa [#allocation5], 0
    %22 = vsyncpa [#allocation6], 0
    %s23 = scalar_lea.sflag [#allocation6], 1
    %24 = vsyncpa %s23, 0
    loop: start=0, step=1, limit=4
    $region2: #{tpu_custom_call.1} parent=1 // loop_pre_header
      _
    $region3: #{tpu_custom_call.1} parent=1 // loop_header
      %s26 = sphi 0, %s30
      %p27 = scmp.ge.s32.totalorder %s26, 4
      %s33 = sphi 0, %s45
      %s34 = sphi 0, %s41
      %s35 = sphi 0, %s33
      %s36 = sphi 0, %s34
      %s37 = sphi 0, %s35
      %s38 = sphi 0, %s36
      %s46 = sphi 0, %s46
      %s48 = sphi 0, %s46
      %s49 = sphi 0, %s48
      %s63 = sphi 0, %s49
      %s71 = sphi 0, %s73
      %s74 = sphi 0, %s71
      %s75 = sphi 0, %s74
      %s91 = sphi 0, %s75
      %s97 = sphi 0, %s99
      %s100 = sphi 0, %s97
      %s101 = sphi 0, %s100
      %s117 = sphi 0, %s101
      %s125 = sphi 0, %s127
      %s128 = sphi 0, %s125
      %s129 = sphi 0, %s128
      %s145 = sphi 0, %s129
      %s149 = sphi 0, %s149
      %s151 = sphi 0, %s149
      %s152 = sphi 0, %s151
      %s166 = sphi 0, %s152
      %s170 = sphi 0, %s170
      %s172 = sphi 0, %s170
      %s173 = sphi 0, %s172
      %s187 = sphi 0, %s173
      %s191 = sphi 0, %s191
      %s193 = sphi 0, %s191
      %s194 = sphi 0, %s193
      %s208 = sphi 0, %s194
      %s216 = sphi 0, %s218
      %s219 = sphi 0, %s216
      %s220 = sphi 0, %s219
      %s236 = sphi 0, %s220
    $region4: #{tpu_custom_call.1} parent=1 // loop_header_branch
      %29 = sbr.rel (%p27) target = $region8
    $region5: #{tpu_custom_call.1} parent=1 // loop_body
      %s31 = ssub.s32 %s26, 1
      %s32 = ssub.s32 %s26, 2
      %s39 = sadd.s32 1, %s34
      %p40 = scmp.ge.s32.totalorder %s39, 1
      %s41 = scalar_select %p40, 0, %s39
      %s42 = sadd.s32 1, %s33
      %s43 = scalar_select %p40, %s42, %s33
      %p44 = scmp.ge.s32.totalorder %s43, 2
      %s45 = scalar_select %p44, 0, %s43
      %s47 = sadd.s32 %s46, 1
      %p50 = scmp.eq.s32.totalorder %s26, 1
      %p51 = scmp.ne.s32.totalorder %s46, %s48
      %p52 = scmp.eq.s32.totalorder %s26, 0
      %p53 = por %p51, %p52
      %p54 = scmp.ne.s32.totalorder %s46, %s48
      %p55 = scmp.eq.s32.totalorder %s31, 1
      %p56 = por %p54, %p55
      %p57 = scmp.ne.s32.totalorder %s48, %s49
      %p58 = scmp.eq.s32.totalorder %s31, 0
      %p59 = por %p57, %p58
      %p60 = scmp.ne.s32.totalorder %s48, %s49
      %p61 = scmp.eq.s32.totalorder %s32, 1
      %p62 = por %p60, %p61
      %p64 = scmp.ne.s32.totalorder %s49, %s63
      %p65 = scmp.eq.s32.totalorder %s32, 0
      %p66 = por %p64, %p65
      %s67 = sadd.s32 %s33, %s34
      %s68 = sadd.s32 %s45, %s41
      %s69 = ssub.s32 %s67, %s68
      %p70 = scmp.eq.s32.totalorder %s69, 0
      %s72 = sadd.s32 %s71, 1
      %s73 = scalar_select %p70, %s71, %s72
      %p76 = pneg %p70
      %p77 = scmp.eq.s32.totalorder %s26, 1
      %p78 = por %p76, %p77
      %p79 = scmp.ne.s32.totalorder %s71, %s74
      %p80 = scmp.eq.s32.totalorder %s26, 0
      %p81 = por %p79, %p80
      %p82 = scmp.ne.s32.totalorder %s71, %s74
      %p83 = scmp.eq.s32.totalorder %s31, 1
      %p84 = por %p82, %p83
      %p85 = scmp.ne.s32.totalorder %s74, %s75
      %p86 = scmp.eq.s32.totalorder %s31, 0
      %p87 = por %p85, %p86
      %p88 = scmp.ne.s32.totalorder %s74, %s75
      %p89 = scmp.eq.s32.totalorder %s32, 1
      %p90 = por %p88, %p89
      %p92 = scmp.ne.s32.totalorder %s75, %s91
      %p93 = scmp.eq.s32.totalorder %s32, 0
      %p94 = por %p92, %p93
      %s95 = ssub.s32 %s34, %s41
      %p96 = scmp.eq.s32.totalorder %s95, 0
      %s98 = sadd.s32 %s97, 1
      %s99 = scalar_select %p96, %s97, %s98
      %p102 = pneg %p96
      %p103 = scmp.eq.s32.totalorder %s26, 1
      %p104 = por %p102, %p103
      %p105 = scmp.ne.s32.totalorder %s97, %s100
      %p106 = scmp.eq.s32.totalorder %s26, 0
      %p107 = por %p105, %p106
      %p108 = scmp.ne.s32.totalorder %s97, %s100
      %p109 = scmp.eq.s32.totalorder %s31, 1
      %p110 = por %p108, %p109
      %p111 = scmp.ne.s32.totalorder %s100, %s101
      %p112 = scmp.eq.s32.totalorder %s31, 0
      %p113 = por %p111, %p112
      %p114 = scmp.ne.s32.totalorder %s100, %s101
      %p115 = scmp.eq.s32.totalorder %s32, 1
      %p116 = por %p114, %p115
      %p118 = scmp.ne.s32.totalorder %s101, %s117
      %p119 = scmp.eq.s32.totalorder %s32, 0
      %p120 = por %p118, %p119
      %s121 = sadd.s32 %s33, %s34
      %s122 = sadd.s32 %s45, %s41
      %s123 = ssub.s32 %s121, %s122
      %p124 = scmp.eq.s32.totalorder %s123, 0
      %s126 = sadd.s32 %s125, 1
      %s127 = scalar_select %p124, %s125, %s126
      %p130 = pneg %p124
      %p131 = scmp.eq.s32.totalorder %s26, 1
      %p132 = por %p130, %p131
      %p133 = scmp.ne.s32.totalorder %s125, %s128
      %p134 = scmp.eq.s32.totalorder %s26, 0
      %p135 = por %p133, %p134
      %p136 = scmp.ne.s32.totalorder %s125, %s128
      %p137 = scmp.eq.s32.totalorder %s31, 1
      %p138 = por %p136, %p137
      %p139 = scmp.ne.s32.totalorder %s128, %s129
      %p140 = scmp.eq.s32.totalorder %s31, 0
      %p141 = por %p139, %p140
      %p142 = scmp.ne.s32.totalorder %s128, %s129
      %p143 = scmp.eq.s32.totalorder %s32, 1
      %p144 = por %p142, %p143
      %p146 = scmp.ne.s32.totalorder %s129, %s145
      %p147 = scmp.eq.s32.totalorder %s32, 0
      %p148 = por %p146, %p147
      %s150 = sadd.s32 %s149, 1
      %p153 = scmp.eq.s32.totalorder %s26, 1
      %p154 = scmp.ne.s32.totalorder %s149, %s151
      %p155 = scmp.eq.s32.totalorder %s26, 0
      %p156 = por %p154, %p155
      %p157 = scmp.ne.s32.totalorder %s149, %s151
      %p158 = scmp.eq.s32.totalorder %s31, 1
      %p159 = por %p157, %p158
      %p160 = scmp.ne.s32.totalorder %s151, %s152
      %p161 = scmp.eq.s32.totalorder %s31, 0
      %p162 = por %p160, %p161
      %p163 = scmp.ne.s32.totalorder %s151, %s152
      %p164 = scmp.eq.s32.totalorder %s32, 1
      %p165 = por %p163, %p164
      %p167 = scmp.ne.s32.totalorder %s152, %s166
      %p168 = scmp.eq.s32.totalorder %s32, 0
      %p169 = por %p167, %p168
      %s171 = sadd.s32 %s170, 1
      %p174 = scmp.eq.s32.totalorder %s26, 1
      %p175 = scmp.ne.s32.totalorder %s170, %s172
      %p176 = scmp.eq.s32.totalorder %s26, 0
      %p177 = por %p175, %p176
      %p178 = scmp.ne.s32.totalorder %s170, %s172
      %p179 = scmp.eq.s32.totalorder %s31, 1
      %p180 = por %p178, %p179
      %p181 = scmp.ne.s32.totalorder %s172, %s173
      %p182 = scmp.eq.s32.totalorder %s31, 0
      %p183 = por %p181, %p182
      %p184 = scmp.ne.s32.totalorder %s172, %s173
      %p185 = scmp.eq.s32.totalorder %s32, 1
      %p186 = por %p184, %p185
      %p188 = scmp.ne.s32.totalorder %s173, %s187
      %p189 = scmp.eq.s32.totalorder %s32, 0
      %p190 = por %p188, %p189
      %s192 = sadd.s32 %s191, 1
      %p195 = scmp.eq.s32.totalorder %s26, 1
      %p196 = scmp.ne.s32.totalorder %s191, %s193
      %p197 = scmp.eq.s32.totalorder %s26, 0
      %p198 = por %p196, %p197
      %p199 = scmp.ne.s32.totalorder %s191, %s193
      %p200 = scmp.eq.s32.totalorder %s31, 1
      %p201 = por %p199, %p200
      %p202 = scmp.ne.s32.totalorder %s193, %s194
      %p203 = scmp.eq.s32.totalorder %s31, 0
      %p204 = por %p202, %p203
      %p205 = scmp.ne.s32.totalorder %s193, %s194
      %p206 = scmp.eq.s32.totalorder %s32, 1
      %p207 = por %p205, %p206
      %p209 = scmp.ne.s32.totalorder %s194, %s208
      %p210 = scmp.eq.s32.totalorder %s32, 0
      %p211 = por %p209, %p210
      %s212 = sadd.s32 %s33, %s34
      %s213 = sadd.s32 %s45, %s41
      %s214 = ssub.s32 %s212, %s213
      %p215 = scmp.eq.s32.totalorder %s214, 0
      %s217 = sadd.s32 %s216, 1
      %s218 = scalar_select %p215, %s216, %s217
      %p221 = pneg %p215
      %p222 = scmp.eq.s32.totalorder %s26, 1
      %p223 = por %p221, %p222
      %p224 = scmp.ne.s32.totalorder %s216, %s219
      %p225 = scmp.eq.s32.totalorder %s26, 0
      %p226 = por %p224, %p225
      %p227 = scmp.ne.s32.totalorder %s216, %s219
      %p228 = scmp.eq.s32.totalorder %s31, 1
      %p229 = por %p227, %p228
      %p230 = scmp.ne.s32.totalorder %s219, %s220
      %p231 = scmp.eq.s32.totalorder %s31, 0
      %p232 = por %p230, %p231
      %p233 = scmp.ne.s32.totalorder %s219, %s220
      %p234 = scmp.eq.s32.totalorder %s32, 1
      %p235 = por %p233, %p234
      %p237 = scmp.ne.s32.totalorder %s220, %s236
      %p238 = scmp.eq.s32.totalorder %s32, 0
      %p239 = por %p237, %p238
      %p240 = scmp.le.s32.totalorder 1, %s26
      %p241 = scmp.lt.s32.totalorder %s26, 3
      %p242 = pnand %p240, %p241
      %p243 = pneg %p242
      // Predicated region
      $region9: #{tpu_custom_call.1} parent=5 // pred_check
        _
      $region10: #{tpu_custom_call.1} parent=5 // pred_check_branch
        %245 = sbr.rel (%p242) target = $region12
      $region11: #{tpu_custom_call.1} parent=5 // pred_region
        %s246 = ssub.s32 %s26, 1
        // Predicated region
        $region13: #{tpu_custom_call.1} parent=11 // pred_check
          %p247 = pneg %p59
        $region14: #{tpu_custom_call.1} parent=11 // pred_check_branch
          %249 = sbr.rel (%p247) target = $region16
        $region15: #{tpu_custom_call.1} parent=11 // pred_region
          %251 = vsyncadd [#allocation5], 0
          %s252 = sshll.u32 %s1, 4
          %s253 = int_to_ptr.hbm [resolvable:$true] %s252
          %s254 = sshll.u32 [#allocation4], 4
          %s255 = int_to_ptr.vmem [resolvable:$true] %s254
          %260 = dma.hbm_to_vmem [thread:$0]  %s253, 8192, %s255, [#allocation5], 128, 128, 8
        $region16: #{tpu_custom_call.1} parent=11 // pred_fallthru
          _
        // Predicated region
        $region17: #{tpu_custom_call.1} parent=11 // pred_check
          %p261 = pneg %p113
        $region18: #{tpu_custom_call.1} parent=11 // pred_check_branch
          %263 = sbr.rel (%p261) target = $region20
        $region19: #{tpu_custom_call.1} parent=11 // pred_region
          %s264 = smul.u32 2, %s36
          %p265 = scmp.lt.s32.totalorder %s264, 1
          %s266 = scalar_select %p265, %s264, 1
          %s267 = smul.addr %s266, 8
          %s268 = scalar_lea.vmem %s3, %s267
          %s269 = smul.u32 2, %s36
        $region20: #{tpu_custom_call.1} parent=11 // pred_fallthru
          _
        // Predicated region
        $region21: #{tpu_custom_call.1} parent=11 // pred_check
          %p270 = pneg %p162
        $region22: #{tpu_custom_call.1} parent=11 // pred_check_branch
          %272 = sbr.rel (%p270) target = $region24
        $region23: #{tpu_custom_call.1} parent=11 // pred_region
          _
        $region24: #{tpu_custom_call.1} parent=11 // pred_fallthru
          _
        // Predicated region
        $region25: #{tpu_custom_call.1} parent=11 // pred_check
          %p273 = pneg %p183
        $region26: #{tpu_custom_call.1} parent=11 // pred_check_branch
          %275 = sbr.rel (%p273) target = $region28
        $region27: #{tpu_custom_call.1} parent=11 // pred_region
          _
        $region28: #{tpu_custom_call.1} parent=11 // pred_fallthru
          _
        // Predicated region
        $region29: #{tpu_custom_call.1} parent=11 // pred_check
          %p276 = pneg %p204
        $region30: #{tpu_custom_call.1} parent=11 // pred_check_branch
          %278 = sbr.rel (%p276) target = $region32
        $region31: #{tpu_custom_call.1} parent=11 // pred_region
          _
        $region32: #{tpu_custom_call.1} parent=11 // pred_fallthru
          _
      $region12: #{tpu_custom_call.1} parent=5 // pred_fallthru
        _
      %p279 = scmp.lt.s32.totalorder %s26, 2
      // Predicated region
      $region33: #{tpu_custom_call.1} parent=5 // pred_check
        %p280 = pneg %p279
      $region34: #{tpu_custom_call.1} parent=5 // pred_check_branch
        %282 = sbr.rel (%p280) target = $region36
      $region35: #{tpu_custom_call.1} parent=5 // pred_region
        // Predicated region
        $region37: #{tpu_custom_call.1} parent=35 // pred_check
          %p283 = pneg %p81
        $region38: #{tpu_custom_call.1} parent=35 // pred_check_branch
          %285 = sbr.rel (%p283) target = $region40
        $region39: #{tpu_custom_call.1} parent=35 // pred_region
          %s286 = sadd.s32 %s33, %s34
          %s287 = smul.u32 2, %s286
          %p288 = scmp.lt.s32.totalorder %s287, 3
          %s289 = scalar_select %p288, %s287, 3
          %s290 = smul.addr %s289, 8
          %s291 = scalar_lea.vmem %s2, %s290
          %s292 = sadd.s32 %s33, %s34
          %s293 = smul.u32 2, %s292
        $region40: #{tpu_custom_call.1} parent=35 // pred_fallthru
          _
        // Predicated region
        $region41: #{tpu_custom_call.1} parent=35 // pred_check
          %p294 = pneg %p135
        $region42: #{tpu_custom_call.1} parent=35 // pred_check_branch
          %296 = sbr.rel (%p294) target = $region44
        $region43: #{tpu_custom_call.1} parent=35 // pred_region
          %s297 = sadd.s32 %s33, %s34
          %s298 = smul.u32 2, %s297
          %p299 = scmp.lt.s32.totalorder %s298, 3
          %s300 = scalar_select %p299, %s298, 3
          %s301 = smul.addr %s300, 8
          %s302 = scalar_lea.vmem %s4, %s301
          %s303 = sadd.s32 %s33, %s34
          %s304 = smul.u32 2, %s303
        $region44: #{tpu_custom_call.1} parent=35 // pred_fallthru
          _
      $region36: #{tpu_custom_call.1} parent=5 // pred_fallthru
        _
      %p305 = scmp.le.s32.totalorder 1, %s26
      %p306 = scmp.lt.s32.totalorder %s26, 3
      %p307 = pnand %p305, %p306
      %p308 = pneg %p307
      // Predicated region
      $region45: #{tpu_custom_call.1} parent=5 // pred_check
        _
      $region46: #{tpu_custom_call.1} parent=5 // pred_check_branch
        %310 = sbr.rel (%p307) target = $region48
      $region47: #{tpu_custom_call.1} parent=5 // pred_region
        %s311 = ssub.s32 %s26, 1
        // Predicated region
        $region49: #{tpu_custom_call.1} parent=47 // pred_check
          %p312 = pneg %p59
        $region50: #{tpu_custom_call.1} parent=47 // pred_check_branch
          %314 = sbr.rel (%p312) target = $region52
        $region51: #{tpu_custom_call.1} parent=47 // pred_region
          %316 = dma.done [#allocation5], 8192
        $region52: #{tpu_custom_call.1} parent=47 // pred_fallthru
          _
        %p317 = pneg %p59
        %p318 = pneg %p56
        %s319 = sadd.s32 %s35, %s36
        %s320 = smul.u32 2, %s319
        %p321 = scmp.lt.s32.totalorder %s320, 3
        %s322 = scalar_select %p321, %s320, 3
        %s323 = smul.addr %s322, 8
        %s324 = scalar_lea.vmem %s2, %s323
        %p325 = pneg %p87
        %p326 = pneg %p84
        %s327 = smul.u32 2, %s36
        %p328 = scmp.lt.s32.totalorder %s327, 1
        %s329 = scalar_select %p328, %s327, 1
        %s330 = smul.addr %s329, 8
        %s331 = scalar_lea.vmem %s3, %s330
        %p332 = pneg %p113
        %p333 = pneg %p110
        %s334 = sadd.s32 %s35, %s36
        %s335 = smul.u32 2, %s334
        %p336 = scmp.lt.s32.totalorder %s335, 3
        %s337 = scalar_select %p336, %s335, 3
        %s338 = smul.addr %s337, 8
        %s339 = scalar_lea.vmem %s4, %s338
        %p340 = pneg %p141
        %p341 = pneg %p138
        %p342 = pneg %p162
        %p343 = pneg %p159
        %p344 = pneg %p183
        %p345 = pneg %p180
        %p346 = pneg %p204
        %p347 = pneg %p201
        %p348 = pneg %p232
        %p349 = pneg %p229
        %s350 = sand.u32 %s219, 1
        %s351 = scalar_lea.sflag [#allocation6], %s350
        %s352 = sand.u32 %s219, 1
        %s353 = smul.addr %s352, 16
        %s354 = scalar_lea.vmem [#allocation7], %s353
        %s355 = sadd.s32 %s35, %s36
        %s356 = smul.u32 2, %s355
        %p357 = scmp.lt.s32.totalorder %s356, 3
        %s358 = scalar_select %p357, %s356, 3
        %s359 = smul.addr %s358, 8
        %s360 = scalar_lea.vmem %s2, %s359
        %s361 = sadd.s32 %s35, %s36
        %s362 = smul.u32 2, %s361
        %s363 = smul.u32 2, %s36
        %p364 = scmp.lt.s32.totalorder %s363, 1
        %s365 = scalar_select %p364, %s363, 1
        %s366 = smul.addr %s365, 8
        %s367 = scalar_lea.vmem %s3, %s366
        %s368 = smul.u32 2, %s36
        %s369 = sadd.s32 %s35, %s36
        %s370 = smul.u32 2, %s369
        %p371 = scmp.lt.s32.totalorder %s370, 3
        %s372 = scalar_select %p371, %s370, 3
        %s373 = smul.addr %s372, 8
        %s374 = scalar_lea.vmem %s4, %s373
        %s375 = sadd.s32 %s35, %s36
        %s376 = smul.u32 2, %s375
        %s377 = sadd.s32 %s35, %s36
        %s378 = smul.u32 2, %s377
        %v379 = vld [vmem:[%s360] sm:$0xff]
        %v380 = vld [vmem:[%s360 + $0x8] sm:$0xff]
        %v381 = vlaneseq
        %v382 = vand.u32 %v381, 127
        %v383 = vadd.s32 %v382, 128
        %v384 = vadd.s32 %v382, 256
        %v385 = vadd.s32 %v382, 384
        %386 = vset.pattern.permute.xlu0 0
        %387 = vperm.xlu0 %386, %v379
        %v388 = vpop.permute.xlu0 %387
        %389 = vset.pattern.permute.xlu0 0
        %390 = vperm.xlu0 %389, %v380
        %v391 = vpop.permute.xlu0 %390
        %vm392 = vcmp.eq.s32.totalorder %v388, %v382
        %vm393 = vcmp.eq.s32.totalorder %v388, %v383
        %vm394 = vcmp.eq.s32.totalorder %v388, %v384
        %vm395 = vcmp.eq.s32.totalorder %v388, %v385
        %vm396 = vcmp.eq.s32.totalorder %v391, %v382
        %vm397 = vcmp.eq.s32.totalorder %v391, %v383
        %vm398 = vcmp.eq.s32.totalorder %v391, %v384
        %vm399 = vcmp.eq.s32.totalorder %v391, %v385
        %v400 = vsel %vm392, 1, 0
        %v401 = vsel %vm393, 1, 0
        %v402 = vsel %vm394, 1, 0
        %v403 = vsel %vm395, 1, 0
        %v404 = vsel %vm396, 1, 0
        %v405 = vsel %vm397, 1, 0
        %v406 = vsel %vm398, 1, 0
        %v407 = vsel %vm399, 1, 0
        %v408 = vcvt.s32.f32 %v400
        %v409 = vcvt.s32.f32 %v401
        %v410 = vcvt.s32.f32 %v402
        %v411 = vcvt.s32.f32 %v403
        %v412 = vcvt.s32.f32 %v404
        %v413 = vcvt.s32.f32 %v405
        %v414 = vcvt.s32.f32 %v406
        %v415 = vcvt.s32.f32 %v407
        %v416 = vld [vmem:[#allocation4] sm:$0xff]
        %v417 = vld [vmem:[#allocation4 + $0x8] sm:$0xff]
        %v418 = vld [vmem:[#allocation4 + $0x10] sm:$0xff]
        %v419 = vld [vmem:[#allocation4 + $0x18] sm:$0xff]
        %v420 = vld [vmem:[#allocation4 + $0x20] sm:$0xff]
        %v421 = vld [vmem:[#allocation4 + $0x28] sm:$0xff]
        %v422 = vld [vmem:[#allocation4 + $0x30] sm:$0xff]
        %v423 = vld [vmem:[#allocation4 + $0x38] sm:$0xff]
        %v424 = vld [vmem:[#allocation4 + $0x40] sm:$0xff]
        %v425 = vld [vmem:[#allocation4 + $0x48] sm:$0xff]
        %v426 = vld [vmem:[#allocation4 + $0x50] sm:$0xff]
        %v427 = vld [vmem:[#allocation4 + $0x58] sm:$0xff]
        %v428 = vld [vmem:[#allocation4 + $0x60] sm:$0xff]
        %v429 = vld [vmem:[#allocation4 + $0x68] sm:$0xff]
        %v430 = vld [vmem:[#allocation4 + $0x70] sm:$0xff]
        %v431 = vld [vmem:[#allocation4 + $0x78] sm:$0xff]
        %v432 = vld [vmem:[#allocation4 + $0x80] sm:$0xff]
        %v433 = vld [vmem:[#allocation4 + $0x88] sm:$0xff]
        %v434 = vld [vmem:[#allocation4 + $0x90] sm:$0xff]
        %v435 = vld [vmem:[#allocation4 + $0x98] sm:$0xff]
        %v436 = vld [vmem:[#allocation4 + $0xa0] sm:$0xff]
        %v437 = vld [vmem:[#allocation4 + $0xa8] sm:$0xff]
        %v438 = vld [vmem:[#allocation4 + $0xb0] sm:$0xff]
        %v439 = vld [vmem:[#allocation4 + $0xb8] sm:$0xff]
        %v440 = vld [vmem:[#allocation4 + $0xc0] sm:$0xff]
        %v441 = vld [vmem:[#allocation4 + $0xc8] sm:$0xff]
        %v442 = vld [vmem:[#allocation4 + $0xd0] sm:$0xff]
        %v443 = vld [vmem:[#allocation4 + $0xd8] sm:$0xff]
        %v444 = vld [vmem:[#allocation4 + $0xe0] sm:$0xff]
        %v445 = vld [vmem:[#allocation4 + $0xe8] sm:$0xff]
        %v446 = vld [vmem:[#allocation4 + $0xf0] sm:$0xff]
        %v447 = vld [vmem:[#allocation4 + $0xf8] sm:$0xff]
        %v448 = vld [vmem:[#allocation4 + $0x100] sm:$0xff]
        %v449 = vld [vmem:[#allocation4 + $0x108] sm:$0xff]
        %v450 = vld [vmem:[#allocation4 + $0x110] sm:$0xff]
        %v451 = vld [vmem:[#allocation4 + $0x118] sm:$0xff]
        %v452 = vld [vmem:[#allocation4 + $0x120] sm:$0xff]
        %v453 = vld [vmem:[#allocation4 + $0x128] sm:$0xff]
        %v454 = vld [vmem:[#allocation4 + $0x130] sm:$0xff]
        %v455 = vld [vmem:[#allocation4 + $0x138] sm:$0xff]
        %v456 = vld [vmem:[#allocation4 + $0x140] sm:$0xff]
        %v457 = vld [vmem:[#allocation4 + $0x148] sm:$0xff]
        %v458 = vld [vmem:[#allocation4 + $0x150] sm:$0xff]
        %v459 = vld [vmem:[#allocation4 + $0x158] sm:$0xff]
        %v460 = vld [vmem:[#allocation4 + $0x160] sm:$0xff]
        %v461 = vld [vmem:[#allocation4 + $0x168] sm:$0xff]
        %v462 = vld [vmem:[#allocation4 + $0x170] sm:$0xff]
        %v463 = vld [vmem:[#allocation4 + $0x178] sm:$0xff]
        %v464 = vld [vmem:[#allocation4 + $0x180] sm:$0xff]
        %v465 = vld [vmem:[#allocation4 + $0x188] sm:$0xff]
        %v466 = vld [vmem:[#allocation4 + $0x190] sm:$0xff]
        %v467 = vld [vmem:[#allocation4 + $0x198] sm:$0xff]
        %v468 = vld [vmem:[#allocation4 + $0x1a0] sm:$0xff]
        %v469 = vld [vmem:[#allocation4 + $0x1a8] sm:$0xff]
        %v470 = vld [vmem:[#allocation4 + $0x1b0] sm:$0xff]
        %v471 = vld [vmem:[#allocation4 + $0x1b8] sm:$0xff]
        %v472 = vld [vmem:[#allocation4 + $0x1c0] sm:$0xff]
        %v473 = vld [vmem:[#allocation4 + $0x1c8] sm:$0xff]
        %v474 = vld [vmem:[#allocation4 + $0x1d0] sm:$0xff]
        %v475 = vld [vmem:[#allocation4 + $0x1d8] sm:$0xff]
        %v476 = vld [vmem:[#allocation4 + $0x1e0] sm:$0xff]
        %v477 = vld [vmem:[#allocation4 + $0x1e8] sm:$0xff]
        %v478 = vld [vmem:[#allocation4 + $0x1f0] sm:$0xff]
        %v479 = vld [vmem:[#allocation4 + $0x1f8] sm:$0xff]
        %v480 = vld [vmem:[%s367] sm:$0xff]
        %v481 = vld [vmem:[%s367 + $0x8] sm:$0xff]
        %v482 = vand.u32 %v431, 4294901760
        %483 = vmatpush.msra.mxu0 %v482
        %v484 = vand.u32 %v430, 4294901760
        %485 = vmatpush.msra.mxu0 %v484
        %v486 = vand.u32 %v429, 4294901760
        %487 = vmatpush.msra.mxu0 %v486
        %v488 = vand.u32 %v428, 4294901760
        %489 = vmatpush.msra.mxu0 %v488
        %v490 = vand.u32 %v427, 4294901760
        %491 = vmatpush.msra.mxu0 %v490
        %v492 = vand.u32 %v426, 4294901760
        %493 = vmatpush.msra.mxu0 %v492
        %v494 = vand.u32 %v425, 4294901760
        %495 = vmatpush.msra.mxu0 %v494
        %v496 = vand.u32 %v424, 4294901760
        %497 = vmatpush.msra.mxu0 %v496
        %v498 = vand.u32 %v423, 4294901760
        %499 = vmatpush.msra.mxu0 %v498
        %v500 = vand.u32 %v422, 4294901760
        %501 = vmatpush.msra.mxu0 %v500
        %v502 = vand.u32 %v421, 4294901760
        %503 = vmatpush.msra.mxu0 %v502
        %v504 = vand.u32 %v420, 4294901760
        %505 = vmatpush.msra.mxu0 %v504
        %v506 = vand.u32 %v419, 4294901760
        %507 = vmatpush.msra.mxu0 %v506
        %v508 = vand.u32 %v418, 4294901760
        %509 = vmatpush.msra.mxu0 %v508
        %v510 = vand.u32 %v417, 4294901760
        %511 = vmatpush.msra.mxu0 %v510
        %v512 = vand.u32 %v416, 4294901760
        %513 = vmatpush.msra.mxu0 %v512
        %v514 = vand.u32 %v408, 4294901760
        %v515 = vsub.f32 %v408, %v514
        %v516 = vand.u32 %v515, 4294901760
        %v517 = vsub.f32 %v515, %v516
        %v518 = vand.u32 %v517, 4294901760
        %519 = vmatmul.f32.gmra.mxu0 %v518
        %v520 = vpop.f32.mrf.mxu0
        %v521 = vadd.f32 %v480, %v520
        %v522 = vand.u32 %v412, 4294901760
        %v523 = vsub.f32 %v412, %v522
        %v524 = vand.u32 %v523, 4294901760
        %v525 = vsub.f32 %v523, %v524
        %v526 = vand.u32 %v525, 4294901760
        %527 = vmatmul.f32.gmra.mxu0 %v526
        %v528 = vpop.f32.mrf.mxu0
        %v529 = vadd.f32 %v481, %v528
        %530 = vdwg.mxu0
        %v531 = vand.u32 %v431, 4294901760
        %v532 = vsub.f32 %v431, %v531
        %v533 = vand.u32 %v532, 4294901760
        %v534 = vsub.f32 %v532, %v533
        %v535 = vand.u32 %v534, 4294901760
        %536 = vmatpush.msra.mxu0 %v535
        %v537 = vand.u32 %v430, 4294901760
        %v538 = vsub.f32 %v430, %v537
        %v539 = vand.u32 %v538, 4294901760
        %v540 = vsub.f32 %v538, %v539
        %v541 = vand.u32 %v540, 4294901760
        %542 = vmatpush.msra.mxu0 %v541
        %v543 = vand.u32 %v429, 4294901760
        %v544 = vsub.f32 %v429, %v543
        %v545 = vand.u32 %v544, 4294901760
        %v546 = vsub.f32 %v544, %v545
        %v547 = vand.u32 %v546, 4294901760
        %548 = vmatpush.msra.mxu0 %v547
        %v549 = vand.u32 %v428, 4294901760
        %v550 = vsub.f32 %v428, %v549
        %v551 = vand.u32 %v550, 4294901760
        %v552 = vsub.f32 %v550, %v551
        %v553 = vand.u32 %v552, 4294901760
        %554 = vmatpush.msra.mxu0 %v553
        %v555 = vand.u32 %v427, 4294901760
        %v556 = vsub.f32 %v427, %v555
        %v557 = vand.u32 %v556, 4294901760
        %v558 = vsub.f32 %v556, %v557
        %v559 = vand.u32 %v558, 4294901760
        %560 = vmatpush.msra.mxu0 %v559
        %v561 = vand.u32 %v426, 4294901760
        %v562 = vsub.f32 %v426, %v561
        %v563 = vand.u32 %v562, 4294901760
        %v564 = vsub.f32 %v562, %v563
        %v565 = vand.u32 %v564, 4294901760
        %566 = vmatpush.msra.mxu0 %v565
        %v567 = vand.u32 %v425, 4294901760
        %v568 = vsub.f32 %v425, %v567
        %v569 = vand.u32 %v568, 4294901760
        %v570 = vsub.f32 %v568, %v569
        %v571 = vand.u32 %v570, 4294901760
        %572 = vmatpush.msra.mxu0 %v571
        %v573 = vand.u32 %v424, 4294901760
        %v574 = vsub.f32 %v424, %v573
        %v575 = vand.u32 %v574, 4294901760
        %v576 = vsub.f32 %v574, %v575
        %v577 = vand.u32 %v576, 4294901760
        %578 = vmatpush.msra.mxu0 %v577
        %v579 = vand.u32 %v423, 4294901760
        %v580 = vsub.f32 %v423, %v579
        %v581 = vand.u32 %v580, 4294901760
        %v582 = vsub.f32 %v580, %v581
        %v583 = vand.u32 %v582, 4294901760
        %584 = vmatpush.msra.mxu0 %v583
        %v585 = vand.u32 %v422, 4294901760
        %v586 = vsub.f32 %v422, %v585
        %v587 = vand.u32 %v586, 4294901760
        %v588 = vsub.f32 %v586, %v587
        %v589 = vand.u32 %v588, 4294901760
        %590 = vmatpush.msra.mxu0 %v589
        %v591 = vand.u32 %v421, 4294901760
        %v592 = vsub.f32 %v421, %v591
        %v593 = vand.u32 %v592, 4294901760
        %v594 = vsub.f32 %v592, %v593
        %v595 = vand.u32 %v594, 4294901760
        %596 = vmatpush.msra.mxu0 %v595
        %v597 = vand.u32 %v420, 4294901760
        %v598 = vsub.f32 %v420, %v597
        %v599 = vand.u32 %v598, 4294901760
        %v600 = vsub.f32 %v598, %v599
        %v601 = vand.u32 %v600, 4294901760
        %602 = vmatpush.msra.mxu0 %v601
        %v603 = vand.u32 %v419, 4294901760
        %v604 = vsub.f32 %v419, %v603
        %v605 = vand.u32 %v604, 4294901760
        %v606 = vsub.f32 %v604, %v605
        %v607 = vand.u32 %v606, 4294901760
        %608 = vmatpush.msra.mxu0 %v607
        %v609 = vand.u32 %v418, 4294901760
        %v610 = vsub.f32 %v418, %v609
        %v611 = vand.u32 %v610, 4294901760
        %v612 = vsub.f32 %v610, %v611
        %v613 = vand.u32 %v612, 4294901760
        %614 = vmatpush.msra.mxu0 %v613
        %v615 = vand.u32 %v417, 4294901760
        %v616 = vsub.f32 %v417, %v615
        %v617 = vand.u32 %v616, 4294901760
        %v618 = vsub.f32 %v616, %v617
        %v619 = vand.u32 %v618, 4294901760
        %620 = vmatpush.msra.mxu0 %v619
        %v621 = vand.u32 %v416, 4294901760
        %v622 = vsub.f32 %v416, %v621
        %v623 = vand.u32 %v622, 4294901760
        %v624 = vsub.f32 %v622, %v623
        %v625 = vand.u32 %v624, 4294901760
        %626 = vmatpush.msra.mxu0 %v625
        %v627 = vand.u32 %v408, 4294901760
        %628 = vmatmul.f32.gmra.mxu0 %v627
        %v629 = vpop.f32.mrf.mxu0
        %v630 = vadd.f32 %v521, %v629
        %v631 = vand.u32 %v412, 4294901760
        %632 = vmatmul.f32.gmra.mxu0 %v631
        %v633 = vpop.f32.mrf.mxu0
        %v634 = vadd.f32 %v529, %v633
        %635 = vdwg.mxu0
        %v636 = vand.u32 %v431, 4294901760
        %v637 = vsub.f32 %v431, %v636
        %638 = vmatpush.msra.mxu0 %v637
        %v639 = vand.u32 %v430, 4294901760
        %v640 = vsub.f32 %v430, %v639
        %641 = vmatpush.msra.mxu0 %v640
        %v642 = vand.u32 %v429, 4294901760
        %v643 = vsub.f32 %v429, %v642
        %644 = vmatpush.msra.mxu0 %v643
        %v645 = vand.u32 %v428, 4294901760
        %v646 = vsub.f32 %v428, %v645
        %647 = vmatpush.msra.mxu0 %v646
        %v648 = vand.u32 %v427, 4294901760
        %v649 = vsub.f32 %v427, %v648
        %650 = vmatpush.msra.mxu0 %v649
        %v651 = vand.u32 %v426, 4294901760
        %v652 = vsub.f32 %v426, %v651
        %653 = vmatpush.msra.mxu0 %v652
        %v654 = vand.u32 %v425, 4294901760
        %v655 = vsub.f32 %v425, %v654
        %656 = vmatpush.msra.mxu0 %v655
        %v657 = vand.u32 %v424, 4294901760
        %v658 = vsub.f32 %v424, %v657
        %659 = vmatpush.msra.mxu0 %v658
        %v660 = vand.u32 %v423, 4294901760
        %v661 = vsub.f32 %v423, %v660
        %662 = vmatpush.msra.mxu0 %v661
        %v663 = vand.u32 %v422, 4294901760
        %v664 = vsub.f32 %v422, %v663
        %665 = vmatpush.msra.mxu0 %v664
        %v666 = vand.u32 %v421, 4294901760
        %v667 = vsub.f32 %v421, %v666
        %668 = vmatpush.msra.mxu0 %v667
        %v669 = vand.u32 %v420, 4294901760
        %v670 = vsub.f32 %v420, %v669
        %671 = vmatpush.msra.mxu0 %v670
        %v672 = vand.u32 %v419, 4294901760
        %v673 = vsub.f32 %v419, %v672
        %674 = vmatpush.msra.mxu0 %v673
        %v675 = vand.u32 %v418, 4294901760
        %v676 = vsub.f32 %v418, %v675
        %677 = vmatpush.msra.mxu0 %v676
        %v678 = vand.u32 %v417, 4294901760
        %v679 = vsub.f32 %v417, %v678
        %680 = vmatpush.msra.mxu0 %v679
        %v681 = vand.u32 %v416, 4294901760
        %v682 = vsub.f32 %v416, %v681
        %683 = vmatpush.msra.mxu0 %v682
        %v684 = vand.u32 %v408, 4294901760
        %v685 = vsub.f32 %v408, %v684
        %686 = vmatmul.f32.gmra.mxu0 %v685
        %v687 = vpop.f32.mrf.mxu0
        %v688 = vadd.f32 %v630, %v687
        %v689 = vand.u32 %v412, 4294901760
        %v690 = vsub.f32 %v412, %v689
        %691 = vmatmul.f32.gmra.mxu0 %v690
        %v692 = vpop.f32.mrf.mxu0
        %v693 = vadd.f32 %v634, %v692
        %694 = vdwg.mxu0
        %v695 = vand.u32 %v431, 4294901760
        %696 = vmatpush.msra.mxu0 %v695
        %v697 = vand.u32 %v430, 4294901760
        %698 = vmatpush.msra.mxu0 %v697
        %v699 = vand.u32 %v429, 4294901760
        %700 = vmatpush.msra.mxu0 %v699
        %v701 = vand.u32 %v428, 4294901760
        %702 = vmatpush.msra.mxu0 %v701
        %v703 = vand.u32 %v427, 4294901760
        %704 = vmatpush.msra.mxu0 %v703
        %v705 = vand.u32 %v426, 4294901760
        %706 = vmatpush.msra.mxu0 %v705
        %v707 = vand.u32 %v425, 4294901760
        %708 = vmatpush.msra.mxu0 %v707
        %v709 = vand.u32 %v424, 4294901760
        %710 = vmatpush.msra.mxu0 %v709
        %v711 = vand.u32 %v423, 4294901760
        %712 = vmatpush.msra.mxu0 %v711
        %v713 = vand.u32 %v422, 4294901760
        %714 = vmatpush.msra.mxu0 %v713
        %v715 = vand.u32 %v421, 4294901760
        %716 = vmatpush.msra.mxu0 %v715
        %v717 = vand.u32 %v420, 4294901760
        %718 = vmatpush.msra.mxu0 %v717
        %v719 = vand.u32 %v419, 4294901760
        %720 = vmatpush.msra.mxu0 %v719
        %v721 = vand.u32 %v418, 4294901760
        %722 = vmatpush.msra.mxu0 %v721
        %v723 = vand.u32 %v417, 4294901760
        %724 = vmatpush.msra.mxu0 %v723
        %v725 = vand.u32 %v416, 4294901760
        %726 = vmatpush.msra.mxu0 %v725
        %v727 = vand.u32 %v408, 4294901760
        %v728 = vsub.f32 %v408, %v727
        %v729 = vand.u32 %v728, 4294901760
        %730 = vmatmul.f32.gmra.mxu0 %v729
        %v731 = vpop.f32.mrf.mxu0
        %v732 = vadd.f32 %v688, %v731
        %v733 = vand.u32 %v412, 4294901760
        %v734 = vsub.f32 %v412, %v733
        %v735 = vand.u32 %v734, 4294901760
        %736 = vmatmul.f32.gmra.mxu0 %v735
        %v737 = vpop.f32.mrf.mxu0
        %v738 = vadd.f32 %v693, %v737
        %739 = vdwg.mxu0
        %v740 = vand.u32 %v431, 4294901760
        %v741 = vsub.f32 %v431, %v740
        %v742 = vand.u32 %v741, 4294901760
        %743 = vmatpush.msra.mxu0 %v742
        %v744 = vand.u32 %v430, 4294901760
        %v745 = vsub.f32 %v430, %v744
        %v746 = vand.u32 %v745, 4294901760
        %747 = vmatpush.msra.mxu0 %v746
        %v748 = vand.u32 %v429, 4294901760
        %v749 = vsub.f32 %v429, %v748
        %v750 = vand.u32 %v749, 4294901760
        %751 = vmatpush.msra.mxu0 %v750
        %v752 = vand.u32 %v428, 4294901760
        %v753 = vsub.f32 %v428, %v752
        %v754 = vand.u32 %v753, 4294901760
        %755 = vmatpush.msra.mxu0 %v754
        %v756 = vand.u32 %v427, 4294901760
        %v757 = vsub.f32 %v427, %v756
        %v758 = vand.u32 %v757, 4294901760
        %759 = vmatpush.msra.mxu0 %v758
        %v760 = vand.u32 %v426, 4294901760
        %v761 = vsub.f32 %v426, %v760
        %v762 = vand.u32 %v761, 4294901760
        %763 = vmatpush.msra.mxu0 %v762
        %v764 = vand.u32 %v425, 4294901760
        %v765 = vsub.f32 %v425, %v764
        %v766 = vand.u32 %v765, 4294901760
        %767 = vmatpush.msra.mxu0 %v766
        %v768 = vand.u32 %v424, 4294901760
        %v769 = vsub.f32 %v424, %v768
        %v770 = vand.u32 %v769, 4294901760
        %771 = vmatpush.msra.mxu0 %v770
        %v772 = vand.u32 %v423, 4294901760
        %v773 = vsub.f32 %v423, %v772
        %v774 = vand.u32 %v773, 4294901760
        %775 = vmatpush.msra.mxu0 %v774
        %v776 = vand.u32 %v422, 4294901760
        %v777 = vsub.f32 %v422, %v776
        %v778 = vand.u32 %v777, 4294901760
        %779 = vmatpush.msra.mxu0 %v778
        %v780 = vand.u32 %v421, 4294901760
        %v781 = vsub.f32 %v421, %v780
        %v782 = vand.u32 %v781, 4294901760
        %783 = vmatpush.msra.mxu0 %v782
        %v784 = vand.u32 %v420, 4294901760
        %v785 = vsub.f32 %v420, %v784
        %v786 = vand.u32 %v785, 4294901760
        %787 = vmatpush.msra.mxu0 %v786
        %v788 = vand.u32 %v419, 4294901760
        %v789 = vsub.f32 %v419, %v788
        %v790 = vand.u32 %v789, 4294901760
        %791 = vmatpush.msra.mxu0 %v790
        %v792 = vand.u32 %v418, 4294901760
        %v793 = vsub.f32 %v418, %v792
        %v794 = vand.u32 %v793, 4294901760
        %795 = vmatpush.msra.mxu0 %v794
        %v796 = vand.u32 %v417, 4294901760
        %v797 = vsub.f32 %v417, %v796
        %v798 = vand.u32 %v797, 4294901760
        %799 = vmatpush.msra.mxu0 %v798
        %v800 = vand.u32 %v416, 4294901760
        %v801 = vsub.f32 %v416, %v800
        %v802 = vand.u32 %v801, 4294901760
        %803 = vmatpush.msra.mxu0 %v802
        %v804 = vand.u32 %v408, 4294901760
        %805 = vmatmul.f32.gmra.mxu0 %v804
        %v806 = vpop.f32.mrf.mxu0
        %v807 = vadd.f32 %v732, %v806
        %v808 = vand.u32 %v412, 4294901760
        %809 = vmatmul.f32.gmra.mxu0 %v808
        %v810 = vpop.f32.mrf.mxu0
        %v811 = vadd.f32 %v738, %v810
        %812 = vdwg.mxu0
        %v813 = vand.u32 %v431, 4294901760
        %814 = vmatpush.msra.mxu0 %v813
        %v815 = vand.u32 %v430, 4294901760
        %816 = vmatpush.msra.mxu0 %v815
        %v817 = vand.u32 %v429, 4294901760
        %818 = vmatpush.msra.mxu0 %v817
        %v819 = vand.u32 %v428, 4294901760
        %820 = vmatpush.msra.mxu0 %v819
        %v821 = vand.u32 %v427, 4294901760
        %822 = vmatpush.msra.mxu0 %v821
        %v823 = vand.u32 %v426, 4294901760
        %824 = vmatpush.msra.mxu0 %v823
        %v825 = vand.u32 %v425, 4294901760
        %826 = vmatpush.msra.mxu0 %v825
        %v827 = vand.u32 %v424, 4294901760
        %828 = vmatpush.msra.mxu0 %v827
        %v829 = vand.u32 %v423, 4294901760
        %830 = vmatpush.msra.mxu0 %v829
        %v831 = vand.u32 %v422, 4294901760
        %832 = vmatpush.msra.mxu0 %v831
        %v833 = vand.u32 %v421, 4294901760
        %834 = vmatpush.msra.mxu0 %v833
        %v835 = vand.u32 %v420, 4294901760
        %836 = vmatpush.msra.mxu0 %v835
        %v837 = vand.u32 %v419, 4294901760
        %838 = vmatpush.msra.mxu0 %v837
        %v839 = vand.u32 %v418, 4294901760
        %840 = vmatpush.msra.mxu0 %v839
        %v841 = vand.u32 %v417, 4294901760
        %842 = vmatpush.msra.mxu0 %v841
        %v843 = vand.u32 %v416, 4294901760
        %844 = vmatpush.msra.mxu0 %v843
        %v845 = vand.u32 %v408, 4294901760
        %846 = vmatmul.f32.gmra.mxu0 %v845
        %v847 = vpop.f32.mrf.mxu0
        %v848 = vadd.f32 %v807, %v847
        %v849 = vand.u32 %v412, 4294901760
        %850 = vmatmul.f32.gmra.mxu0 %v849
        %v851 = vpop.f32.mrf.mxu0
        %v852 = vadd.f32 %v811, %v851
        %853 = vdwg.mxu0
        %v854 = vand.u32 %v447, 4294901760
        %855 = vmatpush.msra.mxu0 %v854
        %v856 = vand.u32 %v446, 4294901760
        %857 = vmatpush.msra.mxu0 %v856
        %v858 = vand.u32 %v445, 4294901760
        %859 = vmatpush.msra.mxu0 %v858
        %v860 = vand.u32 %v444, 4294901760
        %861 = vmatpush.msra.mxu0 %v860
        %v862 = vand.u32 %v443, 4294901760
        %863 = vmatpush.msra.mxu0 %v862
        %v864 = vand.u32 %v442, 4294901760
        %865 = vmatpush.msra.mxu0 %v864
        %v866 = vand.u32 %v441, 4294901760
        %867 = vmatpush.msra.mxu0 %v866
        %v868 = vand.u32 %v440, 4294901760
        %869 = vmatpush.msra.mxu0 %v868
        %v870 = vand.u32 %v439, 4294901760
        %871 = vmatpush.msra.mxu0 %v870
        %v872 = vand.u32 %v438, 4294901760
        %873 = vmatpush.msra.mxu0 %v872
        %v874 = vand.u32 %v437, 4294901760
        %875 = vmatpush.msra.mxu0 %v874
        %v876 = vand.u32 %v436, 4294901760
        %877 = vmatpush.msra.mxu0 %v876
        %v878 = vand.u32 %v435, 4294901760
        %879 = vmatpush.msra.mxu0 %v878
        %v880 = vand.u32 %v434, 4294901760
        %881 = vmatpush.msra.mxu0 %v880
        %v882 = vand.u32 %v433, 4294901760
        %883 = vmatpush.msra.mxu0 %v882
        %v884 = vand.u32 %v432, 4294901760
        %885 = vmatpush.msra.mxu0 %v884
        %v886 = vand.u32 %v409, 4294901760
        %v887 = vsub.f32 %v409, %v886
        %v888 = vand.u32 %v887, 4294901760
        %v889 = vsub.f32 %v887, %v888
        %v890 = vand.u32 %v889, 4294901760
        %891 = vmatmul.f32.gmra.mxu0 %v890
        %v892 = vpop.f32.mrf.mxu0
        %v893 = vadd.f32 %v848, %v892
        %v894 = vand.u32 %v413, 4294901760
        %v895 = vsub.f32 %v413, %v894
        %v896 = vand.u32 %v895, 4294901760
        %v897 = vsub.f32 %v895, %v896
        %v898 = vand.u32 %v897, 4294901760
        %899 = vmatmul.f32.gmra.mxu0 %v898
        %v900 = vpop.f32.mrf.mxu0
        %v901 = vadd.f32 %v852, %v900
        %902 = vdwg.mxu0
        %v903 = vand.u32 %v447, 4294901760
        %v904 = vsub.f32 %v447, %v903
        %v905 = vand.u32 %v904, 4294901760
        %v906 = vsub.f32 %v904, %v905
        %v907 = vand.u32 %v906, 4294901760
        %908 = vmatpush.msra.mxu0 %v907
        %v909 = vand.u32 %v446, 4294901760
        %v910 = vsub.f32 %v446, %v909
        %v911 = vand.u32 %v910, 4294901760
        %v912 = vsub.f32 %v910, %v911
        %v913 = vand.u32 %v912, 4294901760
        %914 = vmatpush.msra.mxu0 %v913
        %v915 = vand.u32 %v445, 4294901760
        %v916 = vsub.f32 %v445, %v915
        %v917 = vand.u32 %v916, 4294901760
        %v918 = vsub.f32 %v916, %v917
        %v919 = vand.u32 %v918, 4294901760
        %920 = vmatpush.msra.mxu0 %v919
        %v921 = vand.u32 %v444, 4294901760
        %v922 = vsub.f32 %v444, %v921
        %v923 = vand.u32 %v922, 4294901760
        %v924 = vsub.f32 %v922, %v923
        %v925 = vand.u32 %v924, 4294901760
        %926 = vmatpush.msra.mxu0 %v925
        %v927 = vand.u32 %v443, 4294901760
        %v928 = vsub.f32 %v443, %v927
        %v929 = vand.u32 %v928, 4294901760
        %v930 = vsub.f32 %v928, %v929
        %v931 = vand.u32 %v930, 4294901760
        %932 = vmatpush.msra.mxu0 %v931
        %v933 = vand.u32 %v442, 4294901760
        %v934 = vsub.f32 %v442, %v933
        %v935 = vand.u32 %v934, 4294901760
        %v936 = vsub.f32 %v934, %v935
        %v937 = vand.u32 %v936, 4294901760
        %938 = vmatpush.msra.mxu0 %v937
        %v939 = vand.u32 %v441, 4294901760
        %v940 = vsub.f32 %v441, %v939
        %v941 = vand.u32 %v940, 4294901760
        %v942 = vsub.f32 %v940, %v941
        %v943 = vand.u32 %v942, 4294901760
        %944 = vmatpush.msra.mxu0 %v943
        %v945 = vand.u32 %v440, 4294901760
        %v946 = vsub.f32 %v440, %v945
        %v947 = vand.u32 %v946, 4294901760
        %v948 = vsub.f32 %v946, %v947
        %v949 = vand.u32 %v948, 4294901760
        %950 = vmatpush.msra.mxu0 %v949
        %v951 = vand.u32 %v439, 4294901760
        %v952 = vsub.f32 %v439, %v951
        %v953 = vand.u32 %v952, 4294901760
        %v954 = vsub.f32 %v952, %v953
        %v955 = vand.u32 %v954, 4294901760
        %956 = vmatpush.msra.mxu0 %v955
        %v957 = vand.u32 %v438, 4294901760
        %v958 = vsub.f32 %v438, %v957
        %v959 = vand.u32 %v958, 4294901760
        %v960 = vsub.f32 %v958, %v959
        %v961 = vand.u32 %v960, 4294901760
        %962 = vmatpush.msra.mxu0 %v961
        %v963 = vand.u32 %v437, 4294901760
        %v964 = vsub.f32 %v437, %v963
        %v965 = vand.u32 %v964, 4294901760
        %v966 = vsub.f32 %v964, %v965
        %v967 = vand.u32 %v966, 4294901760
        %968 = vmatpush.msra.mxu0 %v967
        %v969 = vand.u32 %v436, 4294901760
        %v970 = vsub.f32 %v436, %v969
        %v971 = vand.u32 %v970, 4294901760
        %v972 = vsub.f32 %v970, %v971
        %v973 = vand.u32 %v972, 4294901760
        %974 = vmatpush.msra.mxu0 %v973
        %v975 = vand.u32 %v435, 4294901760
        %v976 = vsub.f32 %v435, %v975
        %v977 = vand.u32 %v976, 4294901760
        %v978 = vsub.f32 %v976, %v977
        %v979 = vand.u32 %v978, 4294901760
        %980 = vmatpush.msra.mxu0 %v979
        %v981 = vand.u32 %v434, 4294901760
        %v982 = vsub.f32 %v434, %v981
        %v983 = vand.u32 %v982, 4294901760
        %v984 = vsub.f32 %v982, %v983
        %v985 = vand.u32 %v984, 4294901760
        %986 = vmatpush.msra.mxu0 %v985
        %v987 = vand.u32 %v433, 4294901760
        %v988 = vsub.f32 %v433, %v987
        %v989 = vand.u32 %v988, 4294901760
        %v990 = vsub.f32 %v988, %v989
        %v991 = vand.u32 %v990, 4294901760
        %992 = vmatpush.msra.mxu0 %v991
        %v993 = vand.u32 %v432, 4294901760
        %v994 = vsub.f32 %v432, %v993
        %v995 = vand.u32 %v994, 4294901760
        %v996 = vsub.f32 %v994, %v995
        %v997 = vand.u32 %v996, 4294901760
        %998 = vmatpush.msra.mxu0 %v997
        %v999 = vand.u32 %v409, 4294901760
        %1000 = vmatmul.f32.gmra.mxu0 %v999
        %v1001 = vpop.f32.mrf.mxu0
        %v1002 = vadd.f32 %v893, %v1001
        %v1003 = vand.u32 %v413, 4294901760
        %1004 = vmatmul.f32.gmra.mxu0 %v1003
        %v1005 = vpop.f32.mrf.mxu0
        %v1006 = vadd.f32 %v901, %v1005
        %1007 = vdwg.mxu0
        %v1008 = vand.u32 %v447, 4294901760
        %v1009 = vsub.f32 %v447, %v1008
        %1010 = vmatpush.msra.mxu0 %v1009
        %v1011 = vand.u32 %v446, 4294901760
        %v1012 = vsub.f32 %v446, %v1011
        %1013 = vmatpush.msra.mxu0 %v1012
        %v1014 = vand.u32 %v445, 4294901760
        %v1015 = vsub.f32 %v445, %v1014
        %1016 = vmatpush.msra.mxu0 %v1015
        %v1017 = vand.u32 %v444, 4294901760
        %v1018 = vsub.f32 %v444, %v1017
        %1019 = vmatpush.msra.mxu0 %v1018
        %v1020 = vand.u32 %v443, 4294901760
        %v1021 = vsub.f32 %v443, %v1020
        %1022 = vmatpush.msra.mxu0 %v1021
        %v1023 = vand.u32 %v442, 4294901760
        %v1024 = vsub.f32 %v442, %v1023
        %1025 = vmatpush.msra.mxu0 %v1024
        %v1026 = vand.u32 %v441, 4294901760
        %v1027 = vsub.f32 %v441, %v1026
        %1028 = vmatpush.msra.mxu0 %v1027
        %v1029 = vand.u32 %v440, 4294901760
        %v1030 = vsub.f32 %v440, %v1029
        %1031 = vmatpush.msra.mxu0 %v1030
        %v1032 = vand.u32 %v439, 4294901760
        %v1033 = vsub.f32 %v439, %v1032
        %1034 = vmatpush.msra.mxu0 %v1033
        %v1035 = vand.u32 %v438, 4294901760
        %v1036 = vsub.f32 %v438, %v1035
        %1037 = vmatpush.msra.mxu0 %v1036
        %v1038 = vand.u32 %v437, 4294901760
        %v1039 = vsub.f32 %v437, %v1038
        %1040 = vmatpush.msra.mxu0 %v1039
        %v1041 = vand.u32 %v436, 4294901760
        %v1042 = vsub.f32 %v436, %v1041
        %1043 = vmatpush.msra.mxu0 %v1042
        %v1044 = vand.u32 %v435, 4294901760
        %v1045 = vsub.f32 %v435, %v1044
        %1046 = vmatpush.msra.mxu0 %v1045
        %v1047 = vand.u32 %v434, 4294901760
        %v1048 = vsub.f32 %v434, %v1047
        %1049 = vmatpush.msra.mxu0 %v1048
        %v1050 = vand.u32 %v433, 4294901760
        %v1051 = vsub.f32 %v433, %v1050
        %1052 = vmatpush.msra.mxu0 %v1051
        %v1053 = vand.u32 %v432, 4294901760
        %v1054 = vsub.f32 %v432, %v1053
        %1055 = vmatpush.msra.mxu0 %v1054
        %v1056 = vand.u32 %v409, 4294901760
        %v1057 = vsub.f32 %v409, %v1056
        %1058 = vmatmul.f32.gmra.mxu0 %v1057
        %v1059 = vpop.f32.mrf.mxu0
        %v1060 = vadd.f32 %v1002, %v1059
        %v1061 = vand.u32 %v413, 4294901760
        %v1062 = vsub.f32 %v413, %v1061
        %1063 = vmatmul.f32.gmra.mxu0 %v1062
        %v1064 = vpop.f32.mrf.mxu0
        %v1065 = vadd.f32 %v1006, %v1064
        %1066 = vdwg.mxu0
        %v1067 = vand.u32 %v447, 4294901760
        %1068 = vmatpush.msra.mxu0 %v1067
        %v1069 = vand.u32 %v446, 4294901760
        %1070 = vmatpush.msra.mxu0 %v1069
        %v1071 = vand.u32 %v445, 4294901760
        %1072 = vmatpush.msra.mxu0 %v1071
        %v1073 = vand.u32 %v444, 4294901760
        %1074 = vmatpush.msra.mxu0 %v1073
        %v1075 = vand.u32 %v443, 4294901760
        %1076 = vmatpush.msra.mxu0 %v1075
        %v1077 = vand.u32 %v442, 4294901760
        %1078 = vmatpush.msra.mxu0 %v1077
        %v1079 = vand.u32 %v441, 4294901760
        %1080 = vmatpush.msra.mxu0 %v1079
        %v1081 = vand.u32 %v440, 4294901760
        %1082 = vmatpush.msra.mxu0 %v1081
        %v1083 = vand.u32 %v439, 4294901760
        %1084 = vmatpush.msra.mxu0 %v1083
        %v1085 = vand.u32 %v438, 4294901760
        %1086 = vmatpush.msra.mxu0 %v1085
        %v1087 = vand.u32 %v437, 4294901760
        %1088 = vmatpush.msra.mxu0 %v1087
        %v1089 = vand.u32 %v436, 4294901760
        %1090 = vmatpush.msra.mxu0 %v1089
        %v1091 = vand.u32 %v435, 4294901760
        %1092 = vmatpush.msra.mxu0 %v1091
        %v1093 = vand.u32 %v434, 4294901760
        %1094 = vmatpush.msra.mxu0 %v1093
        %v1095 = vand.u32 %v433, 4294901760
        %1096 = vmatpush.msra.mxu0 %v1095
        %v1097 = vand.u32 %v432, 4294901760
        %1098 = vmatpush.msra.mxu0 %v1097
        %v1099 = vand.u32 %v409, 4294901760
        %v1100 = vsub.f32 %v409, %v1099
        %v1101 = vand.u32 %v1100, 4294901760
        %1102 = vmatmul.f32.gmra.mxu0 %v1101
        %v1103 = vpop.f32.mrf.mxu0
        %v1104 = vadd.f32 %v1060, %v1103
        %v1105 = vand.u32 %v413, 4294901760
        %v1106 = vsub.f32 %v413, %v1105
        %v1107 = vand.u32 %v1106, 4294901760
        %1108 = vmatmul.f32.gmra.mxu0 %v1107
        %v1109 = vpop.f32.mrf.mxu0
        %v1110 = vadd.f32 %v1065, %v1109
        %1111 = vdwg.mxu0
        %v1112 = vand.u32 %v447, 4294901760
        %v1113 = vsub.f32 %v447, %v1112
        %v1114 = vand.u32 %v1113, 4294901760
        %1115 = vmatpush.msra.mxu0 %v1114
        %v1116 = vand.u32 %v446, 4294901760
        %v1117 = vsub.f32 %v446, %v1116
        %v1118 = vand.u32 %v1117, 4294901760
        %1119 = vmatpush.msra.mxu0 %v1118
        %v1120 = vand.u32 %v445, 4294901760
        %v1121 = vsub.f32 %v445, %v1120
        %v1122 = vand.u32 %v1121, 4294901760
        %1123 = vmatpush.msra.mxu0 %v1122
        %v1124 = vand.u32 %v444, 4294901760
        %v1125 = vsub.f32 %v444, %v1124
        %v1126 = vand.u32 %v1125, 4294901760
        %1127 = vmatpush.msra.mxu0 %v1126
        %v1128 = vand.u32 %v443, 4294901760
        %v1129 = vsub.f32 %v443, %v1128
        %v1130 = vand.u32 %v1129, 4294901760
        %1131 = vmatpush.msra.mxu0 %v1130
        %v1132 = vand.u32 %v442, 4294901760
        %v1133 = vsub.f32 %v442, %v1132
        %v1134 = vand.u32 %v1133, 4294901760
        %1135 = vmatpush.msra.mxu0 %v1134
        %v1136 = vand.u32 %v441, 4294901760
        %v1137 = vsub.f32 %v441, %v1136
        %v1138 = vand.u32 %v1137, 4294901760
        %1139 = vmatpush.msra.mxu0 %v1138
        %v1140 = vand.u32 %v440, 4294901760
        %v1141 = vsub.f32 %v440, %v1140
        %v1142 = vand.u32 %v1141, 4294901760
        %1143 = vmatpush.msra.mxu0 %v1142
        %v1144 = vand.u32 %v439, 4294901760
        %v1145 = vsub.f32 %v439, %v1144
        %v1146 = vand.u32 %v1145, 4294901760
        %1147 = vmatpush.msra.mxu0 %v1146
        %v1148 = vand.u32 %v438, 4294901760
        %v1149 = vsub.f32 %v438, %v1148
        %v1150 = vand.u32 %v1149, 4294901760
        %1151 = vmatpush.msra.mxu0 %v1150
        %v1152 = vand.u32 %v437, 4294901760
        %v1153 = vsub.f32 %v437, %v1152
        %v1154 = vand.u32 %v1153, 4294901760
        %1155 = vmatpush.msra.mxu0 %v1154
        %v1156 = vand.u32 %v436, 4294901760
        %v1157 = vsub.f32 %v436, %v1156
        %v1158 = vand.u32 %v1157, 4294901760
        %1159 = vmatpush.msra.mxu0 %v1158
        %v1160 = vand.u32 %v435, 4294901760
        %v1161 = vsub.f32 %v435, %v1160
        %v1162 = vand.u32 %v1161, 4294901760
        %1163 = vmatpush.msra.mxu0 %v1162
        %v1164 = vand.u32 %v434, 4294901760
        %v1165 = vsub.f32 %v434, %v1164
        %v1166 = vand.u32 %v1165, 4294901760
        %1167 = vmatpush.msra.mxu0 %v1166
        %v1168 = vand.u32 %v433, 4294901760
        %v1169 = vsub.f32 %v433, %v1168
        %v1170 = vand.u32 %v1169, 4294901760
        %1171 = vmatpush.msra.mxu0 %v1170
        %v1172 = vand.u32 %v432, 4294901760
        %v1173 = vsub.f32 %v432, %v1172
        %v1174 = vand.u32 %v1173, 4294901760
        %1175 = vmatpush.msra.mxu0 %v1174
        %v1176 = vand.u32 %v409, 4294901760
        %1177 = vmatmul.f32.gmra.mxu0 %v1176
        %v1178 = vpop.f32.mrf.mxu0
        %v1179 = vadd.f32 %v1104, %v1178
        %v1180 = vand.u32 %v413, 4294901760
        %1181 = vmatmul.f32.gmra.mxu0 %v1180
        %v1182 = vpop.f32.mrf.mxu0
        %v1183 = vadd.f32 %v1110, %v1182
        %1184 = vdwg.mxu0
        %v1185 = vand.u32 %v447, 4294901760
        %1186 = vmatpush.msra.mxu0 %v1185
        %v1187 = vand.u32 %v446, 4294901760
        %1188 = vmatpush.msra.mxu0 %v1187
        %v1189 = vand.u32 %v445, 4294901760
        %1190 = vmatpush.msra.mxu0 %v1189
        %v1191 = vand.u32 %v444, 4294901760
        %1192 = vmatpush.msra.mxu0 %v1191
        %v1193 = vand.u32 %v443, 4294901760
        %1194 = vmatpush.msra.mxu0 %v1193
        %v1195 = vand.u32 %v442, 4294901760
        %1196 = vmatpush.msra.mxu0 %v1195
        %v1197 = vand.u32 %v441, 4294901760
        %1198 = vmatpush.msra.mxu0 %v1197
        %v1199 = vand.u32 %v440, 4294901760
        %1200 = vmatpush.msra.mxu0 %v1199
        %v1201 = vand.u32 %v439, 4294901760
        %1202 = vmatpush.msra.mxu0 %v1201
        %v1203 = vand.u32 %v438, 4294901760
        %1204 = vmatpush.msra.mxu0 %v1203
        %v1205 = vand.u32 %v437, 4294901760
        %1206 = vmatpush.msra.mxu0 %v1205
        %v1207 = vand.u32 %v436, 4294901760
        %1208 = vmatpush.msra.mxu0 %v1207
        %v1209 = vand.u32 %v435, 4294901760
        %1210 = vmatpush.msra.mxu0 %v1209
        %v1211 = vand.u32 %v434, 4294901760
        %1212 = vmatpush.msra.mxu0 %v1211
        %v1213 = vand.u32 %v433, 4294901760
        %1214 = vmatpush.msra.mxu0 %v1213
        %v1215 = vand.u32 %v432, 4294901760
        %1216 = vmatpush.msra.mxu0 %v1215
        %v1217 = vand.u32 %v409, 4294901760
        %1218 = vmatmul.f32.gmra.mxu0 %v1217
        %v1219 = vpop.f32.mrf.mxu0
        %v1220 = vadd.f32 %v1179, %v1219
        %v1221 = vand.u32 %v413, 4294901760
        %1222 = vmatmul.f32.gmra.mxu0 %v1221
        %v1223 = vpop.f32.mrf.mxu0
        %v1224 = vadd.f32 %v1183, %v1223
        %1225 = vdwg.mxu0
        %v1226 = vand.u32 %v463, 4294901760
        %1227 = vmatpush.msra.mxu0 %v1226
        %v1228 = vand.u32 %v462, 4294901760
        %1229 = vmatpush.msra.mxu0 %v1228
        %v1230 = vand.u32 %v461, 4294901760
        %1231 = vmatpush.msra.mxu0 %v1230
        %v1232 = vand.u32 %v460, 4294901760
        %1233 = vmatpush.msra.mxu0 %v1232
        %v1234 = vand.u32 %v459, 4294901760
        %1235 = vmatpush.msra.mxu0 %v1234
        %v1236 = vand.u32 %v458, 4294901760
        %1237 = vmatpush.msra.mxu0 %v1236
        %v1238 = vand.u32 %v457, 4294901760
        %1239 = vmatpush.msra.mxu0 %v1238
        %v1240 = vand.u32 %v456, 4294901760
        %1241 = vmatpush.msra.mxu0 %v1240
        %v1242 = vand.u32 %v455, 4294901760
        %1243 = vmatpush.msra.mxu0 %v1242
        %v1244 = vand.u32 %v454, 4294901760
        %1245 = vmatpush.msra.mxu0 %v1244
        %v1246 = vand.u32 %v453, 4294901760
        %1247 = vmatpush.msra.mxu0 %v1246
        %v1248 = vand.u32 %v452, 4294901760
        %1249 = vmatpush.msra.mxu0 %v1248
        %v1250 = vand.u32 %v451, 4294901760
        %1251 = vmatpush.msra.mxu0 %v1250
        %v1252 = vand.u32 %v450, 4294901760
        %1253 = vmatpush.msra.mxu0 %v1252
        %v1254 = vand.u32 %v449, 4294901760
        %1255 = vmatpush.msra.mxu0 %v1254
        %v1256 = vand.u32 %v448, 4294901760
        %1257 = vmatpush.msra.mxu0 %v1256
        %v1258 = vand.u32 %v410, 4294901760
        %v1259 = vsub.f32 %v410, %v1258
        %v1260 = vand.u32 %v1259, 4294901760
        %v1261 = vsub.f32 %v1259, %v1260
        %v1262 = vand.u32 %v1261, 4294901760
        %1263 = vmatmul.f32.gmra.mxu0 %v1262
        %v1264 = vpop.f32.mrf.mxu0
        %v1265 = vadd.f32 %v1220, %v1264
        %v1266 = vand.u32 %v414, 4294901760
        %v1267 = vsub.f32 %v414, %v1266
        %v1268 = vand.u32 %v1267, 4294901760
        %v1269 = vsub.f32 %v1267, %v1268
        %v1270 = vand.u32 %v1269, 4294901760
        %1271 = vmatmul.f32.gmra.mxu0 %v1270
        %v1272 = vpop.f32.mrf.mxu0
        %v1273 = vadd.f32 %v1224, %v1272
        %1274 = vdwg.mxu0
        %v1275 = vand.u32 %v463, 4294901760
        %v1276 = vsub.f32 %v463, %v1275
        %v1277 = vand.u32 %v1276, 4294901760
        %v1278 = vsub.f32 %v1276, %v1277
        %v1279 = vand.u32 %v1278, 4294901760
        %1280 = vmatpush.msra.mxu0 %v1279
        %v1281 = vand.u32 %v462, 4294901760
        %v1282 = vsub.f32 %v462, %v1281
        %v1283 = vand.u32 %v1282, 4294901760
        %v1284 = vsub.f32 %v1282, %v1283
        %v1285 = vand.u32 %v1284, 4294901760
        %1286 = vmatpush.msra.mxu0 %v1285
        %v1287 = vand.u32 %v461, 4294901760
        %v1288 = vsub.f32 %v461, %v1287
        %v1289 = vand.u32 %v1288, 4294901760
        %v1290 = vsub.f32 %v1288, %v1289
        %v1291 = vand.u32 %v1290, 4294901760
        %1292 = vmatpush.msra.mxu0 %v1291
        %v1293 = vand.u32 %v460, 4294901760
        %v1294 = vsub.f32 %v460, %v1293
        %v1295 = vand.u32 %v1294, 4294901760
        %v1296 = vsub.f32 %v1294, %v1295
        %v1297 = vand.u32 %v1296, 4294901760
        %1298 = vmatpush.msra.mxu0 %v1297
        %v1299 = vand.u32 %v459, 4294901760
        %v1300 = vsub.f32 %v459, %v1299
        %v1301 = vand.u32 %v1300, 4294901760
        %v1302 = vsub.f32 %v1300, %v1301
        %v1303 = vand.u32 %v1302, 4294901760
        %1304 = vmatpush.msra.mxu0 %v1303
        %v1305 = vand.u32 %v458, 4294901760
        %v1306 = vsub.f32 %v458, %v1305
        %v1307 = vand.u32 %v1306, 4294901760
        %v1308 = vsub.f32 %v1306, %v1307
        %v1309 = vand.u32 %v1308, 4294901760
        %1310 = vmatpush.msra.mxu0 %v1309
        %v1311 = vand.u32 %v457, 4294901760
        %v1312 = vsub.f32 %v457, %v1311
        %v1313 = vand.u32 %v1312, 4294901760
        %v1314 = vsub.f32 %v1312, %v1313
        %v1315 = vand.u32 %v1314, 4294901760
        %1316 = vmatpush.msra.mxu0 %v1315
        %v1317 = vand.u32 %v456, 4294901760
        %v1318 = vsub.f32 %v456, %v1317
        %v1319 = vand.u32 %v1318, 4294901760
        %v1320 = vsub.f32 %v1318, %v1319
        %v1321 = vand.u32 %v1320, 4294901760
        %1322 = vmatpush.msra.mxu0 %v1321
        %v1323 = vand.u32 %v455, 4294901760
        %v1324 = vsub.f32 %v455, %v1323
        %v1325 = vand.u32 %v1324, 4294901760
        %v1326 = vsub.f32 %v1324, %v1325
        %v1327 = vand.u32 %v1326, 4294901760
        %1328 = vmatpush.msra.mxu0 %v1327
        %v1329 = vand.u32 %v454, 4294901760
        %v1330 = vsub.f32 %v454, %v1329
        %v1331 = vand.u32 %v1330, 4294901760
        %v1332 = vsub.f32 %v1330, %v1331
        %v1333 = vand.u32 %v1332, 4294901760
        %1334 = vmatpush.msra.mxu0 %v1333
        %v1335 = vand.u32 %v453, 4294901760
        %v1336 = vsub.f32 %v453, %v1335
        %v1337 = vand.u32 %v1336, 4294901760
        %v1338 = vsub.f32 %v1336, %v1337
        %v1339 = vand.u32 %v1338, 4294901760
        %1340 = vmatpush.msra.mxu0 %v1339
        %v1341 = vand.u32 %v452, 4294901760
        %v1342 = vsub.f32 %v452, %v1341
        %v1343 = vand.u32 %v1342, 4294901760
        %v1344 = vsub.f32 %v1342, %v1343
        %v1345 = vand.u32 %v1344, 4294901760
        %1346 = vmatpush.msra.mxu0 %v1345
        %v1347 = vand.u32 %v451, 4294901760
        %v1348 = vsub.f32 %v451, %v1347
        %v1349 = vand.u32 %v1348, 4294901760
        %v1350 = vsub.f32 %v1348, %v1349
        %v1351 = vand.u32 %v1350, 4294901760
        %1352 = vmatpush.msra.mxu0 %v1351
        %v1353 = vand.u32 %v450, 4294901760
        %v1354 = vsub.f32 %v450, %v1353
        %v1355 = vand.u32 %v1354, 4294901760
        %v1356 = vsub.f32 %v1354, %v1355
        %v1357 = vand.u32 %v1356, 4294901760
        %1358 = vmatpush.msra.mxu0 %v1357
        %v1359 = vand.u32 %v449, 4294901760
        %v1360 = vsub.f32 %v449, %v1359
        %v1361 = vand.u32 %v1360, 4294901760
        %v1362 = vsub.f32 %v1360, %v1361
        %v1363 = vand.u32 %v1362, 4294901760
        %1364 = vmatpush.msra.mxu0 %v1363
        %v1365 = vand.u32 %v448, 4294901760
        %v1366 = vsub.f32 %v448, %v1365
        %v1367 = vand.u32 %v1366, 4294901760
        %v1368 = vsub.f32 %v1366, %v1367
        %v1369 = vand.u32 %v1368, 4294901760
        %1370 = vmatpush.msra.mxu0 %v1369
        %v1371 = vand.u32 %v410, 4294901760
        %1372 = vmatmul.f32.gmra.mxu0 %v1371
        %v1373 = vpop.f32.mrf.mxu0
        %v1374 = vadd.f32 %v1265, %v1373
        %v1375 = vand.u32 %v414, 4294901760
        %1376 = vmatmul.f32.gmra.mxu0 %v1375
        %v1377 = vpop.f32.mrf.mxu0
        %v1378 = vadd.f32 %v1273, %v1377
        %1379 = vdwg.mxu0
        %v1380 = vand.u32 %v463, 4294901760
        %v1381 = vsub.f32 %v463, %v1380
        %1382 = vmatpush.msra.mxu0 %v1381
        %v1383 = vand.u32 %v462, 4294901760
        %v1384 = vsub.f32 %v462, %v1383
        %1385 = vmatpush.msra.mxu0 %v1384
        %v1386 = vand.u32 %v461, 4294901760
        %v1387 = vsub.f32 %v461, %v1386
        %1388 = vmatpush.msra.mxu0 %v1387
        %v1389 = vand.u32 %v460, 4294901760
        %v1390 = vsub.f32 %v460, %v1389
        %1391 = vmatpush.msra.mxu0 %v1390
        %v1392 = vand.u32 %v459, 4294901760
        %v1393 = vsub.f32 %v459, %v1392
        %1394 = vmatpush.msra.mxu0 %v1393
        %v1395 = vand.u32 %v458, 4294901760
        %v1396 = vsub.f32 %v458, %v1395
        %1397 = vmatpush.msra.mxu0 %v1396
        %v1398 = vand.u32 %v457, 4294901760
        %v1399 = vsub.f32 %v457, %v1398
        %1400 = vmatpush.msra.mxu0 %v1399
        %v1401 = vand.u32 %v456, 4294901760
        %v1402 = vsub.f32 %v456, %v1401
        %1403 = vmatpush.msra.mxu0 %v1402
        %v1404 = vand.u32 %v455, 4294901760
        %v1405 = vsub.f32 %v455, %v1404
        %1406 = vmatpush.msra.mxu0 %v1405
        %v1407 = vand.u32 %v454, 4294901760
        %v1408 = vsub.f32 %v454, %v1407
        %1409 = vmatpush.msra.mxu0 %v1408
        %v1410 = vand.u32 %v453, 4294901760
        %v1411 = vsub.f32 %v453, %v1410
        %1412 = vmatpush.msra.mxu0 %v1411
        %v1413 = vand.u32 %v452, 4294901760
        %v1414 = vsub.f32 %v452, %v1413
        %1415 = vmatpush.msra.mxu0 %v1414
        %v1416 = vand.u32 %v451, 4294901760
        %v1417 = vsub.f32 %v451, %v1416
        %1418 = vmatpush.msra.mxu0 %v1417
        %v1419 = vand.u32 %v450, 4294901760
        %v1420 = vsub.f32 %v450, %v1419
        %1421 = vmatpush.msra.mxu0 %v1420
        %v1422 = vand.u32 %v449, 4294901760
        %v1423 = vsub.f32 %v449, %v1422
        %1424 = vmatpush.msra.mxu0 %v1423
        %v1425 = vand.u32 %v448, 4294901760
        %v1426 = vsub.f32 %v448, %v1425
        %1427 = vmatpush.msra.mxu0 %v1426
        %v1428 = vand.u32 %v410, 4294901760
        %v1429 = vsub.f32 %v410, %v1428
        %1430 = vmatmul.f32.gmra.mxu0 %v1429
        %v1431 = vpop.f32.mrf.mxu0
        %v1432 = vadd.f32 %v1374, %v1431
        %v1433 = vand.u32 %v414, 4294901760
        %v1434 = vsub.f32 %v414, %v1433
        %1435 = vmatmul.f32.gmra.mxu0 %v1434
        %v1436 = vpop.f32.mrf.mxu0
        %v1437 = vadd.f32 %v1378, %v1436
        %1438 = vdwg.mxu0
        %v1439 = vand.u32 %v463, 4294901760
        %1440 = vmatpush.msra.mxu0 %v1439
        %v1441 = vand.u32 %v462, 4294901760
        %1442 = vmatpush.msra.mxu0 %v1441
        %v1443 = vand.u32 %v461, 4294901760
        %1444 = vmatpush.msra.mxu0 %v1443
        %v1445 = vand.u32 %v460, 4294901760
        %1446 = vmatpush.msra.mxu0 %v1445
        %v1447 = vand.u32 %v459, 4294901760
        %1448 = vmatpush.msra.mxu0 %v1447
        %v1449 = vand.u32 %v458, 4294901760
        %1450 = vmatpush.msra.mxu0 %v1449
        %v1451 = vand.u32 %v457, 4294901760
        %1452 = vmatpush.msra.mxu0 %v1451
        %v1453 = vand.u32 %v456, 4294901760
        %1454 = vmatpush.msra.mxu0 %v1453
        %v1455 = vand.u32 %v455, 4294901760
        %1456 = vmatpush.msra.mxu0 %v1455
        %v1457 = vand.u32 %v454, 4294901760
        %1458 = vmatpush.msra.mxu0 %v1457
        %v1459 = vand.u32 %v453, 4294901760
        %1460 = vmatpush.msra.mxu0 %v1459
        %v1461 = vand.u32 %v452, 4294901760
        %1462 = vmatpush.msra.mxu0 %v1461
        %v1463 = vand.u32 %v451, 4294901760
        %1464 = vmatpush.msra.mxu0 %v1463
        %v1465 = vand.u32 %v450, 4294901760
        %1466 = vmatpush.msra.mxu0 %v1465
        %v1467 = vand.u32 %v449, 4294901760
        %1468 = vmatpush.msra.mxu0 %v1467
        %v1469 = vand.u32 %v448, 4294901760
        %1470 = vmatpush.msra.mxu0 %v1469
        %v1471 = vand.u32 %v410, 4294901760
        %v1472 = vsub.f32 %v410, %v1471
        %v1473 = vand.u32 %v1472, 4294901760
        %1474 = vmatmul.f32.gmra.mxu0 %v1473
        %v1475 = vpop.f32.mrf.mxu0
        %v1476 = vadd.f32 %v1432, %v1475
        %v1477 = vand.u32 %v414, 4294901760
        %v1478 = vsub.f32 %v414, %v1477
        %v1479 = vand.u32 %v1478, 4294901760
        %1480 = vmatmul.f32.gmra.mxu0 %v1479
        %v1481 = vpop.f32.mrf.mxu0
        %v1482 = vadd.f32 %v1437, %v1481
        %1483 = vdwg.mxu0
        %v1484 = vand.u32 %v463, 4294901760
        %v1485 = vsub.f32 %v463, %v1484
        %v1486 = vand.u32 %v1485, 4294901760
        %1487 = vmatpush.msra.mxu0 %v1486
        %v1488 = vand.u32 %v462, 4294901760
        %v1489 = vsub.f32 %v462, %v1488
        %v1490 = vand.u32 %v1489, 4294901760
        %1491 = vmatpush.msra.mxu0 %v1490
        %v1492 = vand.u32 %v461, 4294901760
        %v1493 = vsub.f32 %v461, %v1492
        %v1494 = vand.u32 %v1493, 4294901760
        %1495 = vmatpush.msra.mxu0 %v1494
        %v1496 = vand.u32 %v460, 4294901760
        %v1497 = vsub.f32 %v460, %v1496
        %v1498 = vand.u32 %v1497, 4294901760
        %1499 = vmatpush.msra.mxu0 %v1498
        %v1500 = vand.u32 %v459, 4294901760
        %v1501 = vsub.f32 %v459, %v1500
        %v1502 = vand.u32 %v1501, 4294901760
        %1503 = vmatpush.msra.mxu0 %v1502
        %v1504 = vand.u32 %v458, 4294901760
        %v1505 = vsub.f32 %v458, %v1504
        %v1506 = vand.u32 %v1505, 4294901760
        %1507 = vmatpush.msra.mxu0 %v1506
        %v1508 = vand.u32 %v457, 4294901760
        %v1509 = vsub.f32 %v457, %v1508
        %v1510 = vand.u32 %v1509, 4294901760
        %1511 = vmatpush.msra.mxu0 %v1510
        %v1512 = vand.u32 %v456, 4294901760
        %v1513 = vsub.f32 %v456, %v1512
        %v1514 = vand.u32 %v1513, 4294901760
        %1515 = vmatpush.msra.mxu0 %v1514
        %v1516 = vand.u32 %v455, 4294901760
        %v1517 = vsub.f32 %v455, %v1516
        %v1518 = vand.u32 %v1517, 4294901760
        %1519 = vmatpush.msra.mxu0 %v1518
        %v1520 = vand.u32 %v454, 4294901760
        %v1521 = vsub.f32 %v454, %v1520
        %v1522 = vand.u32 %v1521, 4294901760
        %1523 = vmatpush.msra.mxu0 %v1522
        %v1524 = vand.u32 %v453, 4294901760
        %v1525 = vsub.f32 %v453, %v1524
        %v1526 = vand.u32 %v1525, 4294901760
        %1527 = vmatpush.msra.mxu0 %v1526
        %v1528 = vand.u32 %v452, 4294901760
        %v1529 = vsub.f32 %v452, %v1528
        %v1530 = vand.u32 %v1529, 4294901760
        %1531 = vmatpush.msra.mxu0 %v1530
        %v1532 = vand.u32 %v451, 4294901760
        %v1533 = vsub.f32 %v451, %v1532
        %v1534 = vand.u32 %v1533, 4294901760
        %1535 = vmatpush.msra.mxu0 %v1534
        %v1536 = vand.u32 %v450, 4294901760
        %v1537 = vsub.f32 %v450, %v1536
        %v1538 = vand.u32 %v1537, 4294901760
        %1539 = vmatpush.msra.mxu0 %v1538
        %v1540 = vand.u32 %v449, 4294901760
        %v1541 = vsub.f32 %v449, %v1540
        %v1542 = vand.u32 %v1541, 4294901760
        %1543 = vmatpush.msra.mxu0 %v1542
        %v1544 = vand.u32 %v448, 4294901760
        %v1545 = vsub.f32 %v448, %v1544
        %v1546 = vand.u32 %v1545, 4294901760
        %1547 = vmatpush.msra.mxu0 %v1546
        %v1548 = vand.u32 %v410, 4294901760
        %1549 = vmatmul.f32.gmra.mxu0 %v1548
        %v1550 = vpop.f32.mrf.mxu0
        %v1551 = vadd.f32 %v1476, %v1550
        %v1552 = vand.u32 %v414, 4294901760
        %1553 = vmatmul.f32.gmra.mxu0 %v1552
        %v1554 = vpop.f32.mrf.mxu0
        %v1555 = vadd.f32 %v1482, %v1554
        %1556 = vdwg.mxu0
        %v1557 = vand.u32 %v463, 4294901760
        %1558 = vmatpush.msra.mxu0 %v1557
        %v1559 = vand.u32 %v462, 4294901760
        %1560 = vmatpush.msra.mxu0 %v1559
        %v1561 = vand.u32 %v461, 4294901760
        %1562 = vmatpush.msra.mxu0 %v1561
        %v1563 = vand.u32 %v460, 4294901760
        %1564 = vmatpush.msra.mxu0 %v1563
        %v1565 = vand.u32 %v459, 4294901760
        %1566 = vmatpush.msra.mxu0 %v1565
        %v1567 = vand.u32 %v458, 4294901760
        %1568 = vmatpush.msra.mxu0 %v1567
        %v1569 = vand.u32 %v457, 4294901760
        %1570 = vmatpush.msra.mxu0 %v1569
        %v1571 = vand.u32 %v456, 4294901760
        %1572 = vmatpush.msra.mxu0 %v1571
        %v1573 = vand.u32 %v455, 4294901760
        %1574 = vmatpush.msra.mxu0 %v1573
        %v1575 = vand.u32 %v454, 4294901760
        %1576 = vmatpush.msra.mxu0 %v1575
        %v1577 = vand.u32 %v453, 4294901760
        %1578 = vmatpush.msra.mxu0 %v1577
        %v1579 = vand.u32 %v452, 4294901760
        %1580 = vmatpush.msra.mxu0 %v1579
        %v1581 = vand.u32 %v451, 4294901760
        %1582 = vmatpush.msra.mxu0 %v1581
        %v1583 = vand.u32 %v450, 4294901760
        %1584 = vmatpush.msra.mxu0 %v1583
        %v1585 = vand.u32 %v449, 4294901760
        %1586 = vmatpush.msra.mxu0 %v1585
        %v1587 = vand.u32 %v448, 4294901760
        %1588 = vmatpush.msra.mxu0 %v1587
        %v1589 = vand.u32 %v410, 4294901760
        %1590 = vmatmul.f32.gmra.mxu0 %v1589
        %v1591 = vpop.f32.mrf.mxu0
        %v1592 = vadd.f32 %v1551, %v1591
        %v1593 = vand.u32 %v414, 4294901760
        %1594 = vmatmul.f32.gmra.mxu0 %v1593
        %v1595 = vpop.f32.mrf.mxu0
        %v1596 = vadd.f32 %v1555, %v1595
        %1597 = vdwg.mxu0
        %v1598 = vand.u32 %v479, 4294901760
        %1599 = vmatpush.msra.mxu0 %v1598
        %v1600 = vand.u32 %v478, 4294901760
        %1601 = vmatpush.msra.mxu0 %v1600
        %v1602 = vand.u32 %v477, 4294901760
        %1603 = vmatpush.msra.mxu0 %v1602
        %v1604 = vand.u32 %v476, 4294901760
        %1605 = vmatpush.msra.mxu0 %v1604
        %v1606 = vand.u32 %v475, 4294901760
        %1607 = vmatpush.msra.mxu0 %v1606
        %v1608 = vand.u32 %v474, 4294901760
        %1609 = vmatpush.msra.mxu0 %v1608
        %v1610 = vand.u32 %v473, 4294901760
        %1611 = vmatpush.msra.mxu0 %v1610
        %v1612 = vand.u32 %v472, 4294901760
        %1613 = vmatpush.msra.mxu0 %v1612
        %v1614 = vand.u32 %v471, 4294901760
        %1615 = vmatpush.msra.mxu0 %v1614
        %v1616 = vand.u32 %v470, 4294901760
        %1617 = vmatpush.msra.mxu0 %v1616
        %v1618 = vand.u32 %v469, 4294901760
        %1619 = vmatpush.msra.mxu0 %v1618
        %v1620 = vand.u32 %v468, 4294901760
        %1621 = vmatpush.msra.mxu0 %v1620
        %v1622 = vand.u32 %v467, 4294901760
        %1623 = vmatpush.msra.mxu0 %v1622
        %v1624 = vand.u32 %v466, 4294901760
        %1625 = vmatpush.msra.mxu0 %v1624
        %v1626 = vand.u32 %v465, 4294901760
        %1627 = vmatpush.msra.mxu0 %v1626
        %v1628 = vand.u32 %v464, 4294901760
        %1629 = vmatpush.msra.mxu0 %v1628
        %v1630 = vand.u32 %v411, 4294901760
        %v1631 = vsub.f32 %v411, %v1630
        %v1632 = vand.u32 %v1631, 4294901760
        %v1633 = vsub.f32 %v1631, %v1632
        %v1634 = vand.u32 %v1633, 4294901760
        %1635 = vmatmul.f32.gmra.mxu0 %v1634
        %v1636 = vpop.f32.mrf.mxu0
        %v1637 = vadd.f32 %v1592, %v1636
        %v1638 = vand.u32 %v415, 4294901760
        %v1639 = vsub.f32 %v415, %v1638
        %v1640 = vand.u32 %v1639, 4294901760
        %v1641 = vsub.f32 %v1639, %v1640
        %v1642 = vand.u32 %v1641, 4294901760
        %1643 = vmatmul.f32.gmra.mxu0 %v1642
        %v1644 = vpop.f32.mrf.mxu0
        %v1645 = vadd.f32 %v1596, %v1644
        %1646 = vdwg.mxu0
        %v1647 = vand.u32 %v479, 4294901760
        %v1648 = vsub.f32 %v479, %v1647
        %v1649 = vand.u32 %v1648, 4294901760
        %v1650 = vsub.f32 %v1648, %v1649
        %v1651 = vand.u32 %v1650, 4294901760
        %1652 = vmatpush.msra.mxu0 %v1651
        %v1653 = vand.u32 %v478, 4294901760
        %v1654 = vsub.f32 %v478, %v1653
        %v1655 = vand.u32 %v1654, 4294901760
        %v1656 = vsub.f32 %v1654, %v1655
        %v1657 = vand.u32 %v1656, 4294901760
        %1658 = vmatpush.msra.mxu0 %v1657
        %v1659 = vand.u32 %v477, 4294901760
        %v1660 = vsub.f32 %v477, %v1659
        %v1661 = vand.u32 %v1660, 4294901760
        %v1662 = vsub.f32 %v1660, %v1661
        %v1663 = vand.u32 %v1662, 4294901760
        %1664 = vmatpush.msra.mxu0 %v1663
        %v1665 = vand.u32 %v476, 4294901760
        %v1666 = vsub.f32 %v476, %v1665
        %v1667 = vand.u32 %v1666, 4294901760
        %v1668 = vsub.f32 %v1666, %v1667
        %v1669 = vand.u32 %v1668, 4294901760
        %1670 = vmatpush.msra.mxu0 %v1669
        %v1671 = vand.u32 %v475, 4294901760
        %v1672 = vsub.f32 %v475, %v1671
        %v1673 = vand.u32 %v1672, 4294901760
        %v1674 = vsub.f32 %v1672, %v1673
        %v1675 = vand.u32 %v1674, 4294901760
        %1676 = vmatpush.msra.mxu0 %v1675
        %v1677 = vand.u32 %v474, 4294901760
        %v1678 = vsub.f32 %v474, %v1677
        %v1679 = vand.u32 %v1678, 4294901760
        %v1680 = vsub.f32 %v1678, %v1679
        %v1681 = vand.u32 %v1680, 4294901760
        %1682 = vmatpush.msra.mxu0 %v1681
        %v1683 = vand.u32 %v473, 4294901760
        %v1684 = vsub.f32 %v473, %v1683
        %v1685 = vand.u32 %v1684, 4294901760
        %v1686 = vsub.f32 %v1684, %v1685
        %v1687 = vand.u32 %v1686, 4294901760
        %1688 = vmatpush.msra.mxu0 %v1687
        %v1689 = vand.u32 %v472, 4294901760
        %v1690 = vsub.f32 %v472, %v1689
        %v1691 = vand.u32 %v1690, 4294901760
        %v1692 = vsub.f32 %v1690, %v1691
        %v1693 = vand.u32 %v1692, 4294901760
        %1694 = vmatpush.msra.mxu0 %v1693
        %v1695 = vand.u32 %v471, 4294901760
        %v1696 = vsub.f32 %v471, %v1695
        %v1697 = vand.u32 %v1696, 4294901760
        %v1698 = vsub.f32 %v1696, %v1697
        %v1699 = vand.u32 %v1698, 4294901760
        %1700 = vmatpush.msra.mxu0 %v1699
        %v1701 = vand.u32 %v470, 4294901760
        %v1702 = vsub.f32 %v470, %v1701
        %v1703 = vand.u32 %v1702, 4294901760
        %v1704 = vsub.f32 %v1702, %v1703
        %v1705 = vand.u32 %v1704, 4294901760
        %1706 = vmatpush.msra.mxu0 %v1705
        %v1707 = vand.u32 %v469, 4294901760
        %v1708 = vsub.f32 %v469, %v1707
        %v1709 = vand.u32 %v1708, 4294901760
        %v1710 = vsub.f32 %v1708, %v1709
        %v1711 = vand.u32 %v1710, 4294901760
        %1712 = vmatpush.msra.mxu0 %v1711
        %v1713 = vand.u32 %v468, 4294901760
        %v1714 = vsub.f32 %v468, %v1713
        %v1715 = vand.u32 %v1714, 4294901760
        %v1716 = vsub.f32 %v1714, %v1715
        %v1717 = vand.u32 %v1716, 4294901760
        %1718 = vmatpush.msra.mxu0 %v1717
        %v1719 = vand.u32 %v467, 4294901760
        %v1720 = vsub.f32 %v467, %v1719
        %v1721 = vand.u32 %v1720, 4294901760
        %v1722 = vsub.f32 %v1720, %v1721
        %v1723 = vand.u32 %v1722, 4294901760
        %1724 = vmatpush.msra.mxu0 %v1723
        %v1725 = vand.u32 %v466, 4294901760
        %v1726 = vsub.f32 %v466, %v1725
        %v1727 = vand.u32 %v1726, 4294901760
        %v1728 = vsub.f32 %v1726, %v1727
        %v1729 = vand.u32 %v1728, 4294901760
        %1730 = vmatpush.msra.mxu0 %v1729
        %v1731 = vand.u32 %v465, 4294901760
        %v1732 = vsub.f32 %v465, %v1731
        %v1733 = vand.u32 %v1732, 4294901760
        %v1734 = vsub.f32 %v1732, %v1733
        %v1735 = vand.u32 %v1734, 4294901760
        %1736 = vmatpush.msra.mxu0 %v1735
        %v1737 = vand.u32 %v464, 4294901760
        %v1738 = vsub.f32 %v464, %v1737
        %v1739 = vand.u32 %v1738, 4294901760
        %v1740 = vsub.f32 %v1738, %v1739
        %v1741 = vand.u32 %v1740, 4294901760
        %1742 = vmatpush.msra.mxu0 %v1741
        %v1743 = vand.u32 %v411, 4294901760
        %1744 = vmatmul.f32.gmra.mxu0 %v1743
        %v1745 = vpop.f32.mrf.mxu0
        %v1746 = vadd.f32 %v1637, %v1745
        %v1747 = vand.u32 %v415, 4294901760
        %1748 = vmatmul.f32.gmra.mxu0 %v1747
        %v1749 = vpop.f32.mrf.mxu0
        %v1750 = vadd.f32 %v1645, %v1749
        %1751 = vdwg.mxu0
        %v1752 = vand.u32 %v479, 4294901760
        %v1753 = vsub.f32 %v479, %v1752
        %1754 = vmatpush.msra.mxu0 %v1753
        %v1755 = vand.u32 %v478, 4294901760
        %v1756 = vsub.f32 %v478, %v1755
        %1757 = vmatpush.msra.mxu0 %v1756
        %v1758 = vand.u32 %v477, 4294901760
        %v1759 = vsub.f32 %v477, %v1758
        %1760 = vmatpush.msra.mxu0 %v1759
        %v1761 = vand.u32 %v476, 4294901760
        %v1762 = vsub.f32 %v476, %v1761
        %1763 = vmatpush.msra.mxu0 %v1762
        %v1764 = vand.u32 %v475, 4294901760
        %v1765 = vsub.f32 %v475, %v1764
        %1766 = vmatpush.msra.mxu0 %v1765
        %v1767 = vand.u32 %v474, 4294901760
        %v1768 = vsub.f32 %v474, %v1767
        %1769 = vmatpush.msra.mxu0 %v1768
        %v1770 = vand.u32 %v473, 4294901760
        %v1771 = vsub.f32 %v473, %v1770
        %1772 = vmatpush.msra.mxu0 %v1771
        %v1773 = vand.u32 %v472, 4294901760
        %v1774 = vsub.f32 %v472, %v1773
        %1775 = vmatpush.msra.mxu0 %v1774
        %v1776 = vand.u32 %v471, 4294901760
        %v1777 = vsub.f32 %v471, %v1776
        %1778 = vmatpush.msra.mxu0 %v1777
        %v1779 = vand.u32 %v470, 4294901760
        %v1780 = vsub.f32 %v470, %v1779
        %1781 = vmatpush.msra.mxu0 %v1780
        %v1782 = vand.u32 %v469, 4294901760
        %v1783 = vsub.f32 %v469, %v1782
        %1784 = vmatpush.msra.mxu0 %v1783
        %v1785 = vand.u32 %v468, 4294901760
        %v1786 = vsub.f32 %v468, %v1785
        %1787 = vmatpush.msra.mxu0 %v1786
        %v1788 = vand.u32 %v467, 4294901760
        %v1789 = vsub.f32 %v467, %v1788
        %1790 = vmatpush.msra.mxu0 %v1789
        %v1791 = vand.u32 %v466, 4294901760
        %v1792 = vsub.f32 %v466, %v1791
        %1793 = vmatpush.msra.mxu0 %v1792
        %v1794 = vand.u32 %v465, 4294901760
        %v1795 = vsub.f32 %v465, %v1794
        %1796 = vmatpush.msra.mxu0 %v1795
        %v1797 = vand.u32 %v464, 4294901760
        %v1798 = vsub.f32 %v464, %v1797
        %1799 = vmatpush.msra.mxu0 %v1798
        %v1800 = vand.u32 %v411, 4294901760
        %v1801 = vsub.f32 %v411, %v1800
        %1802 = vmatmul.f32.gmra.mxu0 %v1801
        %v1803 = vpop.f32.mrf.mxu0
        %v1804 = vadd.f32 %v1746, %v1803
        %v1805 = vand.u32 %v415, 4294901760
        %v1806 = vsub.f32 %v415, %v1805
        %1807 = vmatmul.f32.gmra.mxu0 %v1806
        %v1808 = vpop.f32.mrf.mxu0
        %v1809 = vadd.f32 %v1750, %v1808
        %1810 = vdwg.mxu0
        %v1811 = vand.u32 %v479, 4294901760
        %1812 = vmatpush.msra.mxu0 %v1811
        %v1813 = vand.u32 %v478, 4294901760
        %1814 = vmatpush.msra.mxu0 %v1813
        %v1815 = vand.u32 %v477, 4294901760
        %1816 = vmatpush.msra.mxu0 %v1815
        %v1817 = vand.u32 %v476, 4294901760
        %1818 = vmatpush.msra.mxu0 %v1817
        %v1819 = vand.u32 %v475, 4294901760
        %1820 = vmatpush.msra.mxu0 %v1819
        %v1821 = vand.u32 %v474, 4294901760
        %1822 = vmatpush.msra.mxu0 %v1821
        %v1823 = vand.u32 %v473, 4294901760
        %1824 = vmatpush.msra.mxu0 %v1823
        %v1825 = vand.u32 %v472, 4294901760
        %1826 = vmatpush.msra.mxu0 %v1825
        %v1827 = vand.u32 %v471, 4294901760
        %1828 = vmatpush.msra.mxu0 %v1827
        %v1829 = vand.u32 %v470, 4294901760
        %1830 = vmatpush.msra.mxu0 %v1829
        %v1831 = vand.u32 %v469, 4294901760
        %1832 = vmatpush.msra.mxu0 %v1831
        %v1833 = vand.u32 %v468, 4294901760
        %1834 = vmatpush.msra.mxu0 %v1833
        %v1835 = vand.u32 %v467, 4294901760
        %1836 = vmatpush.msra.mxu0 %v1835
        %v1837 = vand.u32 %v466, 4294901760
        %1838 = vmatpush.msra.mxu0 %v1837
        %v1839 = vand.u32 %v465, 4294901760
        %1840 = vmatpush.msra.mxu0 %v1839
        %v1841 = vand.u32 %v464, 4294901760
        %1842 = vmatpush.msra.mxu0 %v1841
        %v1843 = vand.u32 %v411, 4294901760
        %v1844 = vsub.f32 %v411, %v1843
        %v1845 = vand.u32 %v1844, 4294901760
        %1846 = vmatmul.f32.gmra.mxu0 %v1845
        %v1847 = vpop.f32.mrf.mxu0
        %v1848 = vadd.f32 %v1804, %v1847
        %v1849 = vand.u32 %v415, 4294901760
        %v1850 = vsub.f32 %v415, %v1849
        %v1851 = vand.u32 %v1850, 4294901760
        %1852 = vmatmul.f32.gmra.mxu0 %v1851
        %v1853 = vpop.f32.mrf.mxu0
        %v1854 = vadd.f32 %v1809, %v1853
        %1855 = vdwg.mxu0
        %v1856 = vand.u32 %v479, 4294901760
        %v1857 = vsub.f32 %v479, %v1856
        %v1858 = vand.u32 %v1857, 4294901760
        %1859 = vmatpush.msra.mxu0 %v1858
        %v1860 = vand.u32 %v478, 4294901760
        %v1861 = vsub.f32 %v478, %v1860
        %v1862 = vand.u32 %v1861, 4294901760
        %1863 = vmatpush.msra.mxu0 %v1862
        %v1864 = vand.u32 %v477, 4294901760
        %v1865 = vsub.f32 %v477, %v1864
        %v1866 = vand.u32 %v1865, 4294901760
        %1867 = vmatpush.msra.mxu0 %v1866
        %v1868 = vand.u32 %v476, 4294901760
        %v1869 = vsub.f32 %v476, %v1868
        %v1870 = vand.u32 %v1869, 4294901760
        %1871 = vmatpush.msra.mxu0 %v1870
        %v1872 = vand.u32 %v475, 4294901760
        %v1873 = vsub.f32 %v475, %v1872
        %v1874 = vand.u32 %v1873, 4294901760
        %1875 = vmatpush.msra.mxu0 %v1874
        %v1876 = vand.u32 %v474, 4294901760
        %v1877 = vsub.f32 %v474, %v1876
        %v1878 = vand.u32 %v1877, 4294901760
        %1879 = vmatpush.msra.mxu0 %v1878
        %v1880 = vand.u32 %v473, 4294901760
        %v1881 = vsub.f32 %v473, %v1880
        %v1882 = vand.u32 %v1881, 4294901760
        %1883 = vmatpush.msra.mxu0 %v1882
        %v1884 = vand.u32 %v472, 4294901760
        %v1885 = vsub.f32 %v472, %v1884
        %v1886 = vand.u32 %v1885, 4294901760
        %1887 = vmatpush.msra.mxu0 %v1886
        %v1888 = vand.u32 %v471, 4294901760
        %v1889 = vsub.f32 %v471, %v1888
        %v1890 = vand.u32 %v1889, 4294901760
        %1891 = vmatpush.msra.mxu0 %v1890
        %v1892 = vand.u32 %v470, 4294901760
        %v1893 = vsub.f32 %v470, %v1892
        %v1894 = vand.u32 %v1893, 4294901760
        %1895 = vmatpush.msra.mxu0 %v1894
        %v1896 = vand.u32 %v469, 4294901760
        %v1897 = vsub.f32 %v469, %v1896
        %v1898 = vand.u32 %v1897, 4294901760
        %1899 = vmatpush.msra.mxu0 %v1898
        %v1900 = vand.u32 %v468, 4294901760
        %v1901 = vsub.f32 %v468, %v1900
        %v1902 = vand.u32 %v1901, 4294901760
        %1903 = vmatpush.msra.mxu0 %v1902
        %v1904 = vand.u32 %v467, 4294901760
        %v1905 = vsub.f32 %v467, %v1904
        %v1906 = vand.u32 %v1905, 4294901760
        %1907 = vmatpush.msra.mxu0 %v1906
        %v1908 = vand.u32 %v466, 4294901760
        %v1909 = vsub.f32 %v466, %v1908
        %v1910 = vand.u32 %v1909, 4294901760
        %1911 = vmatpush.msra.mxu0 %v1910
        %v1912 = vand.u32 %v465, 4294901760
        %v1913 = vsub.f32 %v465, %v1912
        %v1914 = vand.u32 %v1913, 4294901760
        %1915 = vmatpush.msra.mxu0 %v1914
        %v1916 = vand.u32 %v464, 4294901760
        %v1917 = vsub.f32 %v464, %v1916
        %v1918 = vand.u32 %v1917, 4294901760
        %1919 = vmatpush.msra.mxu0 %v1918
        %v1920 = vand.u32 %v411, 4294901760
        %1921 = vmatmul.f32.gmra.mxu0 %v1920
        %v1922 = vpop.f32.mrf.mxu0
        %v1923 = vadd.f32 %v1848, %v1922
        %v1924 = vand.u32 %v415, 4294901760
        %1925 = vmatmul.f32.gmra.mxu0 %v1924
        %v1926 = vpop.f32.mrf.mxu0
        %v1927 = vadd.f32 %v1854, %v1926
        %1928 = vdwg.mxu0
        %v1929 = vand.u32 %v479, 4294901760
        %1930 = vmatpush.msra.mxu0 %v1929
        %v1931 = vand.u32 %v478, 4294901760
        %1932 = vmatpush.msra.mxu0 %v1931
        %v1933 = vand.u32 %v477, 4294901760
        %1934 = vmatpush.msra.mxu0 %v1933
        %v1935 = vand.u32 %v476, 4294901760
        %1936 = vmatpush.msra.mxu0 %v1935
        %v1937 = vand.u32 %v475, 4294901760
        %1938 = vmatpush.msra.mxu0 %v1937
        %v1939 = vand.u32 %v474, 4294901760
        %1940 = vmatpush.msra.mxu0 %v1939
        %v1941 = vand.u32 %v473, 4294901760
        %1942 = vmatpush.msra.mxu0 %v1941
        %v1943 = vand.u32 %v472, 4294901760
        %1944 = vmatpush.msra.mxu0 %v1943
        %v1945 = vand.u32 %v471, 4294901760
        %1946 = vmatpush.msra.mxu0 %v1945
        %v1947 = vand.u32 %v470, 4294901760
        %1948 = vmatpush.msra.mxu0 %v1947
        %v1949 = vand.u32 %v469, 4294901760
        %1950 = vmatpush.msra.mxu0 %v1949
        %v1951 = vand.u32 %v468, 4294901760
        %1952 = vmatpush.msra.mxu0 %v1951
        %v1953 = vand.u32 %v467, 4294901760
        %1954 = vmatpush.msra.mxu0 %v1953
        %v1955 = vand.u32 %v466, 4294901760
        %1956 = vmatpush.msra.mxu0 %v1955
        %v1957 = vand.u32 %v465, 4294901760
        %1958 = vmatpush.msra.mxu0 %v1957
        %v1959 = vand.u32 %v464, 4294901760
        %1960 = vmatpush.msra.mxu0 %v1959
        %v1961 = vand.u32 %v411, 4294901760
        %1962 = vmatmul.f32.gmra.mxu0 %v1961
        %v1963 = vpop.f32.mrf.mxu0
        %v1964 = vadd.f32 %v1923, %v1963
        %v1965 = vand.u32 %v415, 4294901760
        %1966 = vmatmul.f32.gmra.mxu0 %v1965
        %v1967 = vpop.f32.mrf.mxu0
        %v1968 = vadd.f32 %v1927, %v1967
        %1969 = vdwg.mxu0
        %v1970 = vld [vmem:[%s374] sm:$0xff]
        %v1971 = vld [vmem:[%s374 + $0x8] sm:$0xff]
        %v1972 = vld [vmem:[%s5] sm:$0x1]
        %vm1973 = vcmp.eq.s32.totalorder %v1970, 1
        %vm1974 = vcmp.eq.s32.totalorder %v1971, 1
        %v1975 = vld [vmem:[%s5 + $0x1] sm:$0x1]
        %v1976 = vsel %vm1973, 1, 0
        %v1977 = vsel %vm1974, 1, 0
        %1978 = vset.pattern.permute.xlu0 0
        %1979 = vperm.xlu0 %1978, %v1976
        %v1980 = vpop.permute.xlu0 %1979
        %1981 = vset.pattern.permute.xlu0 0
        %1982 = vperm.xlu0 %1981, %v1977
        %v1983 = vpop.permute.xlu0 %1982
        %vm1984 = vcmp.eq.s32.totalorder %v1980, 1
        %vm1985 = vcmp.eq.s32.totalorder %v1983, 1
        %v1986 = vperm.slane %v1975, 0
        %v1987 = vperm.slane %v1972, 0
        %v1988 = vsel %vm1984, %v1986, %v1987
        %v1989 = vsel %vm1985, %v1986, %v1987
        %v1990 = vadd.f32 %v1964, %v1988
        %v1991 = vadd.f32 %v1968, %v1989
        %1992 = vadd.xlane.f32.xlu0 %v1990
        %v1993 = vpop.xlane.xlu0 %1992
        %1994 = vadd.xlane.f32.xlu0 %v1991
        %v1995 = vpop.xlane.xlu0 %1994
        %v1996 = vmul.f32 %v1990, %v1990
        %v1997 = vmul.f32 %v1991, %v1991
        %1998 = vadd.xlane.f32.xlu0 %v1996
        %v1999 = vpop.xlane.xlu0 %1998
        %2000 = vadd.xlane.f32.xlu0 %v1997
        %v2001 = vpop.xlane.xlu0 %2000
        %v2002 = vmul.f32 %v1993, 0.0078125
        %v2003 = vmul.f32 %v1995, 0.0078125
        %v2004 = vmul.f32 %v1999, 0.0078125
        %v2005 = vmul.f32 %v2001, 0.0078125
        %v2006 = vmul.f32 %v2002, %v2002
        %v2007 = vmul.f32 %v2003, %v2003
        %v2008 = vsub.f32 %v2004, %v2006
        %v2009 = vsub.f32 %v2005, %v2007
        %v2010 = vmax.f32 %v2008, 0.0
        %v2011 = vmax.f32 %v2009, 0.0
        %v2012 = vadd.f32 %v2010, 1e-12
        %v2013 = vadd.f32 %v2011, 1e-12
        %v2014 = vrsqrt.pop %v2012
        %v2015 = vmul.f32 %v2014, %v2012
        %v2016 = vmul.f32 %v2015, %v2014
        %v2017 = vmul.f32 0.5, %v2016
        %v2018 = vsub.f32 1.5, %v2017
        %v2019 = vmul.f32 %v2014, %v2018
        %vm2020 = vweird.f32 %v2012
        %vm2021 = vweird.f32 %v2014
        %vm2022 = vmor %vm2020, %vm2021
        %v2023 = vsel %vm2022, %v2014, %v2019
        %v2024 = vrsqrt.pop %v2013
        %v2025 = vmul.f32 %v2024, %v2013
        %v2026 = vmul.f32 %v2025, %v2024
        %v2027 = vmul.f32 0.5, %v2026
        %v2028 = vsub.f32 1.5, %v2027
        %v2029 = vmul.f32 %v2024, %v2028
        %vm2030 = vweird.f32 %v2013
        %vm2031 = vweird.f32 %v2024
        %vm2032 = vmor %vm2030, %vm2031
        %v2033 = vsel %vm2032, %v2024, %v2029
        %v2034 = vsub.f32 %v1990, %v2002
        %v2035 = vsub.f32 %v1991, %v2003
        %v2036 = vmul.f32 %v2034, %v2023
        %v2037 = vmul.f32 %v2035, %v2033
        %v2038 = vld [vmem:[%s6] sm:$0x1]
        %v2040 = vperm.slane %v2038, 0
        %v2042 = vmul.f32 %v2036, %v2040
        %v2043 = vmul.f32 %v2037, %v2040
        %v2044 = vld [vmem:[%s7] sm:$0x1]
        %v2046 = vperm.slane %v2044, 0
        %v2048 = vadd.f32 %v2042, %v2046
        %v2049 = vadd.f32 %v2043, %v2046
        %2050 = vst [vmem:[%s354] sm:$0xff] %v2048
        %2051 = vst [vmem:[%s354 + $0x8] sm:$0xff] %v2049
        %s2052 = sand.u32 %s219, 1
        %s2053 = scalar_lea.sflag [#allocation6], %s2052
        %s2054 = sand.u32 %s219, 1
        %s2055 = smul.addr %s2054, 16
        %s2056 = scalar_lea.vmem [#allocation7], %s2055
        // Predicated region
        $region53: #{tpu_custom_call.1} parent=47 // pred_check
          %p2057 = pneg %p229
        $region54: #{tpu_custom_call.1} parent=47 // pred_check_branch
          %2059 = sbr.rel (%p2057) target = $region56
        $region55: #{tpu_custom_call.1} parent=47 // pred_region
          %s2060 = sadd.s32 %s35, %s36
          %s2061 = smul.u32 2, %s2060
          %2063 = vsyncadd %s2053, 0
          %s2064 = smul.addr %s2061, 8
          %s2065 = scalar_lea.hbm %s8, %s2064
          %s2066 = sshll.u32 %s2056, 4
          %s2067 = int_to_ptr.vmem [resolvable:$true] %s2066
          %s2068 = sshll.u32 %s2065, 4
          %s2069 = int_to_ptr.hbm [resolvable:$true] %s2068
          %2074 = dma.vmem_to_hbm [thread:$0]  %s2067, 256, %s2069, %s2053, 128, 128, 8
        $region56: #{tpu_custom_call.1} parent=47 // pred_fallthru
          _
      $region48: #{tpu_custom_call.1} parent=5 // pred_fallthru
        _
      %p2075 = scmp.le.s32.totalorder 2, %s26
      // Predicated region
      $region57: #{tpu_custom_call.1} parent=5 // pred_check
        %p2076 = pneg %p2075
      $region58: #{tpu_custom_call.1} parent=5 // pred_check_branch
        %2078 = sbr.rel (%p2076) target = $region60
      $region59: #{tpu_custom_call.1} parent=5 // pred_region
        %s2079 = ssub.s32 %s26, 2
        // Predicated region
        $region61: #{tpu_custom_call.1} parent=59 // pred_check
          %p2080 = pneg %p235
        $region62: #{tpu_custom_call.1} parent=59 // pred_check_branch
          %2082 = sbr.rel (%p2080) target = $region64
        $region63: #{tpu_custom_call.1} parent=59 // pred_region
          %s2083 = sand.u32 %s220, 1
          %s2084 = scalar_lea.sflag [#allocation6], %s2083
          %s2085 = sand.u32 %s220, 1
          %s2086 = smul.addr %s2085, 16
          %s2087 = scalar_lea.vmem [#allocation7], %s2086
          %2089 = dma.done %s2084, 256
        $region64: #{tpu_custom_call.1} parent=59 // pred_fallthru
          _
      $region60: #{tpu_custom_call.1} parent=5 // pred_fallthru
        _
    $region6: #{tpu_custom_call.1} parent=1 // loop_footer
      %s30 = sadd.s32 1, %s26
    $region7: #{tpu_custom_call.1} parent=1 // loop_footer_branch
      %25 = sbr.rel target = $region3
    $region8: #{tpu_custom_call.1} parent=1 // loop_exit
      _
    %2090 = vsyncpa [#allocation5], 1
    %s2091 = scalar_lea.sflag [#allocation5], 1
    %2092 = vsyncpa %s2091, 1
    %2093 = vsyncpa [#allocation6], 1
    %s2094 = scalar_lea.sflag [#allocation6], 1
    %2095 = vsyncpa %s2094, 1

</llo_original>
